<compile_context>
chip_gen: v5e
topology: v5e:2x2
jax: 0.10.0
libtpu: 0.0.40
codegen_flags: <defaults>
</compile_context>

<pallas_src>
import jax
import jax.numpy as jnp
from jax.experimental import pallas as pl
from jax.experimental.pallas import tpu as pltpu

# ---------------- model hyper-parameters (small, consistent with the module) --
VOCAB = 50
EMBED = 32
HEADS = 4
HEAD_DIM = EMBED // HEADS          # 8
FWD_EXP = 4
FF = FWD_EXP * EMBED               # 128
NUM_LAYERS = 2
MAX_LEN = 16
N = 2
SEQ = 8
NS = N * SEQ                       # 16  batch-flattened tokens
NHS = HEADS * NS                   # 64  stacked attention rows (head, batch, seq)

NT = (((1,), (1,)), ((), ()))      # dot_general dims: contract last dims (A @ B^T)


def _layernorm(x, gamma, beta, eps=1e-5):
    mu = jnp.mean(x, axis=-1, keepdims=True)
    var = jnp.mean(jnp.square(x - mu), axis=-1, keepdims=True)
    return (x - mu) * jax.lax.rsqrt(var + eps) * gamma + beta


# ------------------------------- Pallas kernel --------------------------------
def encoder_kernel(x_ref, bias_ref, w_ref, wff_ref, vec_ref, o_ref):
    """Entire encoder stack (all layers, whole batch) in a single invocation.

    x_ref    : (N*SEQ, EMBED)          token+position embeddings, batch flattened
    bias_ref : (NHS, NHS)              additive bias: 0 inside each (head, batch)
                                       diagonal block for unmasked keys, -1e20
                                       elsewhere (off-block and padded keys)
    w_ref    : (L*4*HEADS, EMBED, HEAD_DIM)
               per layer: [Wq_h (scale folded), Wk_h, Wv_h, Wo_h^T] x HEADS
    wff_ref  : (L*2, EMBED, FF)        [W1, W2^T] per layer
    vec_ref  : (L, 7, FF)              [bo, g1, be1, b1, b2, g2, be2] (E-wide
                                       vectors live in lanes [0:EMBED])
    o_ref    : (N*SEQ, EMBED)
    """
    x = x_ref[...]                         # (NS, E), stays in vregs across layers
    bias = bias_ref[...]                   # (64, 64), loaded once (hoisted)

    for l in range(NUM_LAYERS):            # static unroll, NUM_LAYERS == 2
        base = l * 4 * HEADS

        # --- stacked per-head Q/K/V: rows ordered (head, batch, seq) ----------
        # Each head is a (NS, HEAD_DIM) matmul; the concat is along sublane-tile
        # boundaries (multiples of 8 rows) -> no lane shuffles.
        def stack_heads(off):
            return jnp.concatenate(
                [jnp.dot(x, w_ref[base + off + h],
                         preferred_element_type=jnp.float32)
                 for h in range(HEADS)], axis=0)           # (NHS, HEAD_DIM)

        q_stk = stack_heads(0)             # 1/sqrt(EMBED) folded into Wq host-side
        k_stk = stack_heads(HEADS)
        v_stk = stack_heads(2 * HEADS)

        # --- ONE block-diagonal score matrix for all batches/heads ------------
        s = jax.lax.dot_general(q_stk, k_stk, NT,
                                preferred_element_type=jnp.float32)   # (64, 64)
        s = s + bias                       # masks off-diag blocks + padded keys
        # --- ONE softmax chain per layer (max / exp / sum / reciprocal) -------
        s = s - jnp.max(s, axis=-1, keepdims=True)
        p = jnp.exp(s)                     # masked entries underflow to exactly 0
        p = p * pl.reciprocal(jnp.sum(p, axis=-1, keepdims=True), approx=True)

        # --- ONE P @ V matmul (zero off-diag weights => per-head contexts) ----
        ctx = jnp.dot(p, v_stk, preferred_element_type=jnp.float32)   # (64, 8)

        # --- fc_out: head-concat folded into per-head row blocks of Wo --------
        vl = vec_ref[l]                    # (7, FF)
        attn = vl[0:1, 0:EMBED]            # bo
        for h in range(HEADS):
            attn = attn + jax.lax.dot_general(
                ctx[h * NS:(h + 1) * NS, :],               # sublane-aligned slice
                w_ref[base + 3 * HEADS + h], NT,
                preferred_element_type=jnp.float32)        # (NS, E)

        # --- residual + LayerNorm 1 --------------------------------------------
        h1 = _layernorm(attn + x, vl[1:2, 0:EMBED], vl[2:3, 0:EMBED])

        # --- feed-forward: Linear -> ReLU -> Linear (W2 stored transposed) -----
        ff = jnp.dot(h1, wff_ref[2 * l],
                     preferred_element_type=jnp.float32) + vl[3:4, :]
        ff = jnp.maximum(ff, 0.0)
        ff = jax.lax.dot_general(ff, wff_ref[2 * l + 1], NT,
                                 preferred_element_type=jnp.float32) + vl[4:5, 0:EMBED]

        # --- residual + LayerNorm 2 ---------------------------------------------
        x = _layernorm(ff + h1, vl[5:6, 0:EMBED], vl[6:7, 0:EMBED])

    o_ref[...] = x


# ---------------------- host-side bias / parameter packing ---------------------
def _attention_bias(mask):
    """(NHS, NHS) additive bias from the (N, 1, SEQ) key-padding mask.

    0 where the (head, batch) row/col blocks match AND the key is unmasked
    (mask > 0, matching the reference); -1e20 everywhere else, so the single
    big softmax reproduces the per-head, per-batch softmaxes exactly.
    """
    r = jnp.arange(NHS)
    head = r // NS
    batch = (r // SEQ) % N
    key_ok = (mask[:, 0, :] > 0)[batch, r % SEQ]           # per-column validity
    same = (head[:, None] == head[None, :]) & (batch[:, None] == batch[None, :])
    allowed = same & key_ok[None, :]
    return jnp.where(allowed, jnp.float32(0.0), jnp.float32(-1e20))


def pack_params(params):
    """Pack the 15 per-layer arrays into 3 weight slabs (fewer kernel DMAs)."""
    scale = 1.0 / jnp.sqrt(jnp.float32(EMBED))
    blocks = []
    for l in range(NUM_LAYERS):
        for name, sc in (("wq", scale), ("wk", 1.0), ("wv", 1.0)):
            w = params[name][l] * sc                        # (E, E) block-diag
            for h in range(HEADS):
                blocks.append(w[:, h * HEAD_DIM:(h + 1) * HEAD_DIM])      # (E, D)
        wo = params["wo"][l]                                # (E, E)
        for h in range(HEADS):
            blocks.append(wo[h * HEAD_DIM:(h + 1) * HEAD_DIM, :].T)       # (E, D)
    w_small = jnp.stack(blocks)                             # (L*4*H, E, D)

    wff = jnp.stack([m for l in range(NUM_LAYERS)
                     for m in (params["w1"][l], params["w2"][l].T)])      # (L*2, E, FF)

    def pad_e(v):                                           # (1, E) -> (FF,)
        return jnp.pad(v.reshape(-1), (0, FF - EMBED))

    vecs = jnp.stack([
        jnp.stack([pad_e(params["bo"][l]), pad_e(params["g1"][l]),
                   pad_e(params["be1"][l]), params["b1"][l].reshape(-1),
                   pad_e(params["b2"][l]), pad_e(params["g2"][l]),
                   pad_e(params["be2"][l])])
        for l in range(NUM_LAYERS)])                        # (L, 7, FF)

    return {"word_emb": params["word_emb"], "pos_emb": params["pos_emb"],
            "w_small": w_small, "wff": wff, "vecs": vecs}


# ------------------------------- Encoder forward --------------------------------
def encoder_forward(tokens, mask, packed):
    n, s = tokens.shape
    emb = packed["word_emb"][tokens] + packed["pos_emb"][jnp.arange(s)][None, :, :]
    # dropout -> identity (eval mode)
    x_flat = emb.reshape(n * s, EMBED)
    bias = _attention_bias(mask)                            # (NHS, NHS), built once

    vmem = pl.BlockSpec(memory_space=pltpu.MemorySpace.VMEM)
    out = pl.pallas_call(
        encoder_kernel,
        out_shape=jax.ShapeDtypeStruct((n * s, EMBED), jnp.float32),
        in_specs=[vmem] * 5,
        out_specs=vmem,
    )(x_flat, bias, packed["w_small"], packed["wff"], packed["vecs"])
    return out.reshape(n, s, EMBED)


# ----------------------------- parameter creation ------------------------------
def init_params(key):
    keys = jax.random.split(key, 2 + NUM_LAYERS)
    word_emb = 0.05 * jax.random.normal(keys[0], (VOCAB, EMBED), jnp.float32)
    pos_emb = 0.05 * jax.random.normal(keys[1], (MAX_LEN, EMBED), jnp.float32)

    names = ("wq", "wk", "wv", "wo", "bo", "g1", "be1",
             "w1", "b1", "w2", "b2", "g2", "be2")
    stacks = {k: [] for k in names}
    eye_h = jnp.eye(HEADS, dtype=jnp.float32)
    for l in range(NUM_LAYERS):
        lk = jax.random.split(keys[2 + l], 8)
        # per-head Linear(head_dim, head_dim, bias=False), shared across heads;
        # expanded to block-diagonal (E, E) so x @ W covers all heads at once.
        wq_h = 0.1 * jax.random.normal(lk[0], (HEAD_DIM, HEAD_DIM), jnp.float32)
        wk_h = 0.1 * jax.random.normal(lk[1], (HEAD_DIM, HEAD_DIM), jnp.float32)
        wv_h = 0.1 * jax.random.normal(lk[2], (HEAD_DIM, HEAD_DIM), jnp.float32)
        stacks["wq"].append(jnp.kron(eye_h, wq_h.T))
        stacks["wk"].append(jnp.kron(eye_h, wk_h.T))
        stacks["wv"].append(jnp.kron(eye_h, wv_h.T))
        # fc_out: Linear(E, E)
        stacks["wo"].append(0.1 * jax.random.normal(lk[3], (EMBED, EMBED), jnp.float32).T)
        stacks["bo"].append(0.01 * jax.random.normal(lk[4], (1, EMBED), jnp.float32))
        # LayerNorms (PyTorch default init)
        stacks["g1"].append(jnp.ones((1, EMBED), jnp.float32))
        stacks["be1"].append(jnp.zeros((1, EMBED), jnp.float32))
        stacks["g2"].append(jnp.ones((1, EMBED), jnp.float32))
        stacks["be2"].append(jnp.zeros((1, EMBED), jnp.float32))
        # feed-forward
        stacks["w1"].append(0.1 * jax.random.normal(lk[5], (FF, EMBED), jnp.float32).T)
        stacks["b1"].append(0.01 * jax.random.normal(lk[6], (1, FF), jnp.float32))
        stacks["w2"].append(0.1 * jax.random.normal(lk[7], (EMBED, FF), jnp.float32).T)
        stacks["b2"].append(jnp.zeros((1, EMBED), jnp.float32))

    params = {"word_emb": word_emb, "pos_emb": pos_emb}
    params.update({k: jnp.stack(v) for k, v in stacks.items()})
    return params


# ------------------------------ pure-JAX reference ------------------------------
def encoder_ref(tokens, mask, params):
    n, s = tokens.shape
    out = params["word_emb"][tokens] + params["pos_emb"][jnp.arange(s)][None, :, :]
    scale = jnp.sqrt(jnp.float32(EMBED))
    for l in range(NUM_LAYERS):
        x = out
        q = (x @ params["wq"][l]).reshape(n, s, HEADS, HEAD_DIM)
        k = (x @ params["wk"][l]).reshape(n, s, HEADS, HEAD_DIM)
        v = (x @ params["wv"][l]).reshape(n, s, HEADS, HEAD_DIM)
        en = jnp.einsum('nqhd,nkhd->nhqk', q, k)
        en = jnp.where(mask[:, None, :, :] > 0, en, -1e20)
        att = jax.nn.softmax(en / scale, axis=-1)
        ctx = jnp.einsum('nhqk,nkhd->nqhd', att, v).reshape(n, s, EMBED)
        a = ctx @ params["wo"][l] + params["bo"][l]
        h1 = _layernorm(a + x, params["g1"][l], params["be1"][l])
        ff = (jax.nn.relu(h1 @ params["w1"][l] + params["b1"][l])
              @ params["w2"][l] + params["b2"][l])
        out = _layernorm(ff + h1, params["g2"][l], params["be2"][l])
    return out


if __name__ == "__main__":
    key = jax.random.PRNGKey(0)
    pkey, tkey = jax.random.split(key)
    params = init_params(pkey)
    packed = pack_params(params)

    tokens = jax.random.randint(tkey, (N, SEQ), 1, VOCAB).astype(jnp.int32)
    # src mask: mask out the last key position of batch element 1, keep the rest
    mask = jnp.ones((N, 1, SEQ), jnp.float32).at[1, 0, SEQ - 1].set(0.0)

    fwd = jax.jit(encoder_forward)
    out = jax.block_until_ready(fwd(tokens, mask, packed))

    ref = encoder_ref(tokens, mask, params)
    assert out.shape == (N, SEQ, EMBED)
    assert jnp.all(jnp.isfinite(out))
    # tolerance slightly loosened for the approximate EUP reciprocal in softmax
    assert jnp.allclose(out, ref, rtol=2e-3, atol=2e-3), "mismatch vs reference"

    print("KERNEL_OK")
</pallas_src>

<mosaic_0001>
module attributes {stable_mosaic.version = 11 : i64} {
  func.func @encoder_kernel(%arg0: memref<16x32xf32, #tpu.memory_space<vmem>>, %arg1: memref<64x64xf32, #tpu.memory_space<vmem>>, %arg2: memref<32x32x8xf32, #tpu.memory_space<vmem>>, %arg3: memref<4x32x128xf32, #tpu.memory_space<vmem>>, %arg4: memref<2x7x128xf32, #tpu.memory_space<vmem>>, %arg5: memref<16x32xf32, #tpu.memory_space<vmem>>) attributes {dimension_semantics = [], scalar_prefetch = 0 : i64, scratch_operands = 0 : i64, tpu.core_type = #tpu.core_type<tc>} {
    %c0 = arith.constant 0 : index
    %c0_0 = arith.constant 0 : index
    %0 = vector.load %arg0[%c0, %c0_0] : memref<16x32xf32, #tpu.memory_space<vmem>>, vector<16x32xf32>
    %c0_1 = arith.constant 0 : index
    %c0_2 = arith.constant 0 : index
    %1 = vector.load %arg1[%c0_1, %c0_2] : memref<64x64xf32, #tpu.memory_space<vmem>>, vector<64x64xf32>
    %c0_3 = arith.constant 0 : index
    %c0_4 = arith.constant 0 : index
    %c0_5 = arith.constant 0 : index
    %2 = vector.load %arg2[%c0_3, %c0_4, %c0_5] : memref<32x32x8xf32, #tpu.memory_space<vmem>>, vector<1x32x8xf32>
    %3 = vector.shape_cast %2 : vector<1x32x8xf32> to vector<32x8xf32>
    %cst = arith.constant dense<0.000000e+00> : vector<16x8xf32>
    %4 = tpu.matmul %0, %3, %cst {dimension_numbers = #tpu.dot_dimension_numbers<[1], [0], [0], [1], [0, 0, 1, 1], [], []>} : vector<16x32xf32>, vector<32x8xf32>, vector<16x8xf32> -> vector<16x8xf32>
    %c1 = arith.constant 1 : index
    %c0_6 = arith.constant 0 : index
    %c0_7 = arith.constant 0 : index
    %5 = vector.load %arg2[%c1, %c0_6, %c0_7] : memref<32x32x8xf32, #tpu.memory_space<vmem>>, vector<1x32x8xf32>
    %6 = vector.shape_cast %5 : vector<1x32x8xf32> to vector<32x8xf32>
    %cst_8 = arith.constant dense<0.000000e+00> : vector<16x8xf32>
    %7 = tpu.matmul %0, %6, %cst_8 {dimension_numbers = #tpu.dot_dimension_numbers<[1], [0], [0], [1], [0, 0, 1, 1], [], []>} : vector<16x32xf32>, vector<32x8xf32>, vector<16x8xf32> -> vector<16x8xf32>
    %c2 = arith.constant 2 : index
    %c0_9 = arith.constant 0 : index
    %c0_10 = arith.constant 0 : index
    %8 = vector.load %arg2[%c2, %c0_9, %c0_10] : memref<32x32x8xf32, #tpu.memory_space<vmem>>, vector<1x32x8xf32>
    %9 = vector.shape_cast %8 : vector<1x32x8xf32> to vector<32x8xf32>
    %cst_11 = arith.constant dense<0.000000e+00> : vector<16x8xf32>
    %10 = tpu.matmul %0, %9, %cst_11 {dimension_numbers = #tpu.dot_dimension_numbers<[1], [0], [0], [1], [0, 0, 1, 1], [], []>} : vector<16x32xf32>, vector<32x8xf32>, vector<16x8xf32> -> vector<16x8xf32>
    %c3 = arith.constant 3 : index
    %c0_12 = arith.constant 0 : index
    %c0_13 = arith.constant 0 : index
    %11 = vector.load %arg2[%c3, %c0_12, %c0_13] : memref<32x32x8xf32, #tpu.memory_space<vmem>>, vector<1x32x8xf32>
    %12 = vector.shape_cast %11 : vector<1x32x8xf32> to vector<32x8xf32>
    %cst_14 = arith.constant dense<0.000000e+00> : vector<16x8xf32>
    %13 = tpu.matmul %0, %12, %cst_14 {dimension_numbers = #tpu.dot_dimension_numbers<[1], [0], [0], [1], [0, 0, 1, 1], [], []>} : vector<16x32xf32>, vector<32x8xf32>, vector<16x8xf32> -> vector<16x8xf32>
    %14 = tpu.concatenate %4, %7, %10, %13 in 0 : vector<16x8xf32>, vector<16x8xf32>, vector<16x8xf32>, vector<16x8xf32> -> vector<64x8xf32>
    %c4 = arith.constant 4 : index
    %c0_15 = arith.constant 0 : index
    %c0_16 = arith.constant 0 : index
    %15 = vector.load %arg2[%c4, %c0_15, %c0_16] : memref<32x32x8xf32, #tpu.memory_space<vmem>>, vector<1x32x8xf32>
    %16 = vector.shape_cast %15 : vector<1x32x8xf32> to vector<32x8xf32>
    %cst_17 = arith.constant dense<0.000000e+00> : vector<16x8xf32>
    %17 = tpu.matmul %0, %16, %cst_17 {dimension_numbers = #tpu.dot_dimension_numbers<[1], [0], [0], [1], [0, 0, 1, 1], [], []>} : vector<16x32xf32>, vector<32x8xf32>, vector<16x8xf32> -> vector<16x8xf32>
    %c5 = arith.constant 5 : index
    %c0_18 = arith.constant 0 : index
    %c0_19 = arith.constant 0 : index
    %18 = vector.load %arg2[%c5, %c0_18, %c0_19] : memref<32x32x8xf32, #tpu.memory_space<vmem>>, vector<1x32x8xf32>
    %19 = vector.shape_cast %18 : vector<1x32x8xf32> to vector<32x8xf32>
    %cst_20 = arith.constant dense<0.000000e+00> : vector<16x8xf32>
    %20 = tpu.matmul %0, %19, %cst_20 {dimension_numbers = #tpu.dot_dimension_numbers<[1], [0], [0], [1], [0, 0, 1, 1], [], []>} : vector<16x32xf32>, vector<32x8xf32>, vector<16x8xf32> -> vector<16x8xf32>
    %c6 = arith.constant 6 : index
    %c0_21 = arith.constant 0 : index
    %c0_22 = arith.constant 0 : index
    %21 = vector.load %arg2[%c6, %c0_21, %c0_22] : memref<32x32x8xf32, #tpu.memory_space<vmem>>, vector<1x32x8xf32>
    %22 = vector.shape_cast %21 : vector<1x32x8xf32> to vector<32x8xf32>
    %cst_23 = arith.constant dense<0.000000e+00> : vector<16x8xf32>
    %23 = tpu.matmul %0, %22, %cst_23 {dimension_numbers = #tpu.dot_dimension_numbers<[1], [0], [0], [1], [0, 0, 1, 1], [], []>} : vector<16x32xf32>, vector<32x8xf32>, vector<16x8xf32> -> vector<16x8xf32>
    %c7 = arith.constant 7 : index
    %c0_24 = arith.constant 0 : index
    %c0_25 = arith.constant 0 : index
    %24 = vector.load %arg2[%c7, %c0_24, %c0_25] : memref<32x32x8xf32, #tpu.memory_space<vmem>>, vector<1x32x8xf32>
    %25 = vector.shape_cast %24 : vector<1x32x8xf32> to vector<32x8xf32>
    %cst_26 = arith.constant dense<0.000000e+00> : vector<16x8xf32>
    %26 = tpu.matmul %0, %25, %cst_26 {dimension_numbers = #tpu.dot_dimension_numbers<[1], [0], [0], [1], [0, 0, 1, 1], [], []>} : vector<16x32xf32>, vector<32x8xf32>, vector<16x8xf32> -> vector<16x8xf32>
    %27 = tpu.concatenate %17, %20, %23, %26 in 0 : vector<16x8xf32>, vector<16x8xf32>, vector<16x8xf32>, vector<16x8xf32> -> vector<64x8xf32>
    %c8 = arith.constant 8 : index
    %c0_27 = arith.constant 0 : index
    %c0_28 = arith.constant 0 : index
    %28 = vector.load %arg2[%c8, %c0_27, %c0_28] : memref<32x32x8xf32, #tpu.memory_space<vmem>>, vector<1x32x8xf32>
    %29 = vector.shape_cast %28 : vector<1x32x8xf32> to vector<32x8xf32>
    %cst_29 = arith.constant dense<0.000000e+00> : vector<16x8xf32>
    %30 = tpu.matmul %0, %29, %cst_29 {dimension_numbers = #tpu.dot_dimension_numbers<[1], [0], [0], [1], [0, 0, 1, 1], [], []>} : vector<16x32xf32>, vector<32x8xf32>, vector<16x8xf32> -> vector<16x8xf32>
    %c9 = arith.constant 9 : index
    %c0_30 = arith.constant 0 : index
    %c0_31 = arith.constant 0 : index
    %31 = vector.load %arg2[%c9, %c0_30, %c0_31] : memref<32x32x8xf32, #tpu.memory_space<vmem>>, vector<1x32x8xf32>
    %32 = vector.shape_cast %31 : vector<1x32x8xf32> to vector<32x8xf32>
    %cst_32 = arith.constant dense<0.000000e+00> : vector<16x8xf32>
    %33 = tpu.matmul %0, %32, %cst_32 {dimension_numbers = #tpu.dot_dimension_numbers<[1], [0], [0], [1], [0, 0, 1, 1], [], []>} : vector<16x32xf32>, vector<32x8xf32>, vector<16x8xf32> -> vector<16x8xf32>
    %c10 = arith.constant 10 : index
    %c0_33 = arith.constant 0 : index
    %c0_34 = arith.constant 0 : index
    %34 = vector.load %arg2[%c10, %c0_33, %c0_34] : memref<32x32x8xf32, #tpu.memory_space<vmem>>, vector<1x32x8xf32>
    %35 = vector.shape_cast %34 : vector<1x32x8xf32> to vector<32x8xf32>
    %cst_35 = arith.constant dense<0.000000e+00> : vector<16x8xf32>
    %36 = tpu.matmul %0, %35, %cst_35 {dimension_numbers = #tpu.dot_dimension_numbers<[1], [0], [0], [1], [0, 0, 1, 1], [], []>} : vector<16x32xf32>, vector<32x8xf32>, vector<16x8xf32> -> vector<16x8xf32>
    %c11 = arith.constant 11 : index
    %c0_36 = arith.constant 0 : index
    %c0_37 = arith.constant 0 : index
    %37 = vector.load %arg2[%c11, %c0_36, %c0_37] : memref<32x32x8xf32, #tpu.memory_space<vmem>>, vector<1x32x8xf32>
    %38 = vector.shape_cast %37 : vector<1x32x8xf32> to vector<32x8xf32>
    %cst_38 = arith.constant dense<0.000000e+00> : vector<16x8xf32>
    %39 = tpu.matmul %0, %38, %cst_38 {dimension_numbers = #tpu.dot_dimension_numbers<[1], [0], [0], [1], [0, 0, 1, 1], [], []>} : vector<16x32xf32>, vector<32x8xf32>, vector<16x8xf32> -> vector<16x8xf32>
    %40 = tpu.concatenate %30, %33, %36, %39 in 0 : vector<16x8xf32>, vector<16x8xf32>, vector<16x8xf32>, vector<16x8xf32> -> vector<64x8xf32>
    %cst_39 = arith.constant dense<0.000000e+00> : vector<64x64xf32>
    %41 = tpu.matmul %14, %27, %cst_39 {dimension_numbers = #tpu.dot_dimension_numbers<[1], [1], [0], [0], [0, 0, 1, 0], [], []>} : vector<64x8xf32>, vector<64x8xf32>, vector<64x64xf32> -> vector<64x64xf32>
    %42 = arith.addf %41, %1 : vector<64x64xf32>
    %cst_40 = arith.constant dense<0xFF800000> : vector<64xf32>
    %43 = vector.multi_reduction <maximumf>, %42, %cst_40 [1] : vector<64x64xf32> to vector<64xf32>
    %44 = vector.shape_cast %43 : vector<64xf32> to vector<64x1xf32>
    %45 = vector.broadcast %44 : vector<64x1xf32> to vector<64x64xf32>
    %46 = arith.subf %42, %45 : vector<64x64xf32>
    %47 = math.exp %46 : vector<64x64xf32>
    %cst_41 = arith.constant dense<0.000000e+00> : vector<64xf32>
    %48 = vector.multi_reduction <add>, %47, %cst_41 [1] : vector<64x64xf32> to vector<64xf32>
    %49 = vector.shape_cast %48 : vector<64xf32> to vector<64x1xf32>
    %50 = tpu.reciprocal %49 {approx = true} : vector<64x1xf32> -> vector<64x1xf32>
    %51 = vector.broadcast %50 : vector<64x1xf32> to vector<64x64xf32>
    %52 = arith.mulf %47, %51 : vector<64x64xf32>
    %cst_42 = arith.constant dense<0.000000e+00> : vector<64x8xf32>
    %53 = tpu.matmul %52, %40, %cst_42 {dimension_numbers = #tpu.dot_dimension_numbers<[1], [0], [0], [1], [0, 0, 1, 1], [], []>} : vector<64x64xf32>, vector<64x8xf32>, vector<64x8xf32> -> vector<64x8xf32>
    %c0_43 = arith.constant 0 : index
    %c0_44 = arith.constant 0 : index
    %c0_45 = arith.constant 0 : index
    %54 = vector.load %arg4[%c0_43, %c0_44, %c0_45] : memref<2x7x128xf32, #tpu.memory_space<vmem>>, vector<1x7x128xf32>
    %55 = vector.shape_cast %54 : vector<1x7x128xf32> to vector<7x128xf32>
    %56 = vector.extract_strided_slice %55 {offsets = [0, 0], sizes = [1, 32], strides = [1, 1]} : vector<7x128xf32> to vector<1x32xf32>
    %57 = vector.extract_strided_slice %53 {offsets = [0, 0], sizes = [16, 8], strides = [1, 1]} : vector<64x8xf32> to vector<16x8xf32>
    %c12 = arith.constant 12 : index
    %c0_46 = arith.constant 0 : index
    %c0_47 = arith.constant 0 : index
    %58 = vector.load %arg2[%c12, %c0_46, %c0_47] : memref<32x32x8xf32, #tpu.memory_space<vmem>>, vector<1x32x8xf32>
    %59 = vector.shape_cast %58 : vector<1x32x8xf32> to vector<32x8xf32>
    %cst_48 = arith.constant dense<0.000000e+00> : vector<16x32xf32>
    %60 = tpu.matmul %57, %59, %cst_48 {dimension_numbers = #tpu.dot_dimension_numbers<[1], [1], [0], [0], [0, 0, 1, 0], [], []>} : vector<16x8xf32>, vector<32x8xf32>, vector<16x32xf32> -> vector<16x32xf32>
    %61 = vector.broadcast %56 : vector<1x32xf32> to vector<16x32xf32>
    %62 = arith.addf %61, %60 : vector<16x32xf32>
    %63 = vector.extract_strided_slice %53 {offsets = [16, 0], sizes = [16, 8], strides = [1, 1]} : vector<64x8xf32> to vector<16x8xf32>
    %c13 = arith.constant 13 : index
    %c0_49 = arith.constant 0 : index
    %c0_50 = arith.constant 0 : index
    %64 = vector.load %arg2[%c13, %c0_49, %c0_50] : memref<32x32x8xf32, #tpu.memory_space<vmem>>, vector<1x32x8xf32>
    %65 = vector.shape_cast %64 : vector<1x32x8xf32> to vector<32x8xf32>
    %cst_51 = arith.constant dense<0.000000e+00> : vector<16x32xf32>
    %66 = tpu.matmul %63, %65, %cst_51 {dimension_numbers = #tpu.dot_dimension_numbers<[1], [1], [0], [0], [0, 0, 1, 0], [], []>} : vector<16x8xf32>, vector<32x8xf32>, vector<16x32xf32> -> vector<16x32xf32>
    %67 = arith.addf %62, %66 : vector<16x32xf32>
    %68 = vector.extract_strided_slice %53 {offsets = [32, 0], sizes = [16, 8], strides = [1, 1]} : vector<64x8xf32> to vector<16x8xf32>
    %c14 = arith.constant 14 : index
    %c0_52 = arith.constant 0 : index
    %c0_53 = arith.constant 0 : index
    %69 = vector.load %arg2[%c14, %c0_52, %c0_53] : memref<32x32x8xf32, #tpu.memory_space<vmem>>, vector<1x32x8xf32>
    %70 = vector.shape_cast %69 : vector<1x32x8xf32> to vector<32x8xf32>
    %cst_54 = arith.constant dense<0.000000e+00> : vector<16x32xf32>
    %71 = tpu.matmul %68, %70, %cst_54 {dimension_numbers = #tpu.dot_dimension_numbers<[1], [1], [0], [0], [0, 0, 1, 0], [], []>} : vector<16x8xf32>, vector<32x8xf32>, vector<16x32xf32> -> vector<16x32xf32>
    %72 = arith.addf %67, %71 : vector<16x32xf32>
    %73 = vector.extract_strided_slice %53 {offsets = [48, 0], sizes = [16, 8], strides = [1, 1]} : vector<64x8xf32> to vector<16x8xf32>
    %c15 = arith.constant 15 : index
    %c0_55 = arith.constant 0 : index
    %c0_56 = arith.constant 0 : index
    %74 = vector.load %arg2[%c15, %c0_55, %c0_56] : memref<32x32x8xf32, #tpu.memory_space<vmem>>, vector<1x32x8xf32>
    %75 = vector.shape_cast %74 : vector<1x32x8xf32> to vector<32x8xf32>
    %cst_57 = arith.constant dense<0.000000e+00> : vector<16x32xf32>
    %76 = tpu.matmul %73, %75, %cst_57 {dimension_numbers = #tpu.dot_dimension_numbers<[1], [1], [0], [0], [0, 0, 1, 0], [], []>} : vector<16x8xf32>, vector<32x8xf32>, vector<16x32xf32> -> vector<16x32xf32>
    %77 = arith.addf %72, %76 : vector<16x32xf32>
    %78 = arith.addf %77, %0 : vector<16x32xf32>
    %79 = vector.extract_strided_slice %55 {offsets = [1, 0], sizes = [1, 32], strides = [1, 1]} : vector<7x128xf32> to vector<1x32xf32>
    %80 = vector.extract_strided_slice %55 {offsets = [2, 0], sizes = [1, 32], strides = [1, 1]} : vector<7x128xf32> to vector<1x32xf32>
    %cst_58 = arith.constant dense<0.000000e+00> : vector<16xf32>
    %81 = vector.multi_reduction <add>, %78, %cst_58 [1] : vector<16x32xf32> to vector<16xf32>
    %82 = vector.shape_cast %81 : vector<16xf32> to vector<16x1xf32>
    %cst_59 = arith.constant 3.200000e+01 : f32
    %83 = vector.broadcast %cst_59 : f32 to vector<16x1xf32>
    %84 = arith.divf %82, %83 : vector<16x1xf32>
    %85 = vector.broadcast %84 : vector<16x1xf32> to vector<16x32xf32>
    %86 = arith.subf %78, %85 : vector<16x32xf32>
    %87 = arith.mulf %86, %86 : vector<16x32xf32>
    %cst_60 = arith.constant dense<0.000000e+00> : vector<16xf32>
    %88 = vector.multi_reduction <add>, %87, %cst_60 [1] : vector<16x32xf32> to vector<16xf32>
    %89 = vector.shape_cast %88 : vector<16xf32> to vector<16x1xf32>
    %cst_61 = arith.constant 3.200000e+01 : f32
    %90 = vector.broadcast %cst_61 : f32 to vector<16x1xf32>
    %91 = arith.divf %89, %90 : vector<16x1xf32>
    %92 = vector.broadcast %84 : vector<16x1xf32> to vector<16x32xf32>
    %93 = arith.subf %78, %92 : vector<16x32xf32>
    %cst_62 = arith.constant 9.99999974E-6 : f32
    %94 = vector.broadcast %cst_62 : f32 to vector<16x1xf32>
    %95 = arith.addf %91, %94 : vector<16x1xf32>
    %96 = math.rsqrt %95 : vector<16x1xf32>
    %97 = vector.broadcast %96 : vector<16x1xf32> to vector<16x32xf32>
    %98 = arith.mulf %93, %97 : vector<16x32xf32>
    %99 = vector.broadcast %79 : vector<1x32xf32> to vector<16x32xf32>
    %100 = arith.mulf %98, %99 : vector<16x32xf32>
    %101 = vector.broadcast %80 : vector<1x32xf32> to vector<16x32xf32>
    %102 = arith.addf %100, %101 : vector<16x32xf32>
    %c0_63 = arith.constant 0 : index
    %c0_64 = arith.constant 0 : index
    %c0_65 = arith.constant 0 : index
    %103 = vector.load %arg3[%c0_63, %c0_64, %c0_65] : memref<4x32x128xf32, #tpu.memory_space<vmem>>, vector<1x32x128xf32>
    %104 = vector.shape_cast %103 : vector<1x32x128xf32> to vector<32x128xf32>
    %cst_66 = arith.constant dense<0.000000e+00> : vector<16x128xf32>
    %105 = tpu.matmul %102, %104, %cst_66 {dimension_numbers = #tpu.dot_dimension_numbers<[1], [0], [0], [1], [0, 0, 1, 1], [], []>} : vector<16x32xf32>, vector<32x128xf32>, vector<16x128xf32> -> vector<16x128xf32>
    %106 = vector.extract_strided_slice %55 {offsets = [3, 0], sizes = [1, 128], strides = [1, 1]} : vector<7x128xf32> to vector<1x128xf32>
    %107 = vector.broadcast %106 : vector<1x128xf32> to vector<16x128xf32>
    %108 = arith.addf %105, %107 : vector<16x128xf32>
    %cst_67 = arith.constant 0.000000e+00 : f32
    %109 = vector.broadcast %cst_67 : f32 to vector<16x128xf32>
    %110 = arith.maximumf %108, %109 : vector<16x128xf32>
    %c1_68 = arith.constant 1 : index
    %c0_69 = arith.constant 0 : index
    %c0_70 = arith.constant 0 : index
    %111 = vector.load %arg3[%c1_68, %c0_69, %c0_70] : memref<4x32x128xf32, #tpu.memory_space<vmem>>, vector<1x32x128xf32>
    %112 = vector.shape_cast %111 : vector<1x32x128xf32> to vector<32x128xf32>
    %cst_71 = arith.constant dense<0.000000e+00> : vector<16x32xf32>
    %113 = tpu.matmul %110, %112, %cst_71 {dimension_numbers = #tpu.dot_dimension_numbers<[1], [1], [0], [0], [0, 0, 1, 0], [], []>} : vector<16x128xf32>, vector<32x128xf32>, vector<16x32xf32> -> vector<16x32xf32>
    %114 = vector.extract_strided_slice %55 {offsets = [4, 0], sizes = [1, 32], strides = [1, 1]} : vector<7x128xf32> to vector<1x32xf32>
    %115 = vector.broadcast %114 : vector<1x32xf32> to vector<16x32xf32>
    %116 = arith.addf %113, %115 : vector<16x32xf32>
    %117 = arith.addf %116, %102 : vector<16x32xf32>
    %118 = vector.extract_strided_slice %55 {offsets = [5, 0], sizes = [1, 32], strides = [1, 1]} : vector<7x128xf32> to vector<1x32xf32>
    %119 = vector.extract_strided_slice %55 {offsets = [6, 0], sizes = [1, 32], strides = [1, 1]} : vector<7x128xf32> to vector<1x32xf32>
    %cst_72 = arith.constant dense<0.000000e+00> : vector<16xf32>
    %120 = vector.multi_reduction <add>, %117, %cst_72 [1] : vector<16x32xf32> to vector<16xf32>
    %121 = vector.shape_cast %120 : vector<16xf32> to vector<16x1xf32>
    %cst_73 = arith.constant 3.200000e+01 : f32
    %122 = vector.broadcast %cst_73 : f32 to vector<16x1xf32>
    %123 = arith.divf %121, %122 : vector<16x1xf32>
    %124 = vector.broadcast %123 : vector<16x1xf32> to vector<16x32xf32>
    %125 = arith.subf %117, %124 : vector<16x32xf32>
    %126 = arith.mulf %125, %125 : vector<16x32xf32>
    %cst_74 = arith.constant dense<0.000000e+00> : vector<16xf32>
    %127 = vector.multi_reduction <add>, %126, %cst_74 [1] : vector<16x32xf32> to vector<16xf32>
    %128 = vector.shape_cast %127 : vector<16xf32> to vector<16x1xf32>
    %cst_75 = arith.constant 3.200000e+01 : f32
    %129 = vector.broadcast %cst_75 : f32 to vector<16x1xf32>
    %130 = arith.divf %128, %129 : vector<16x1xf32>
    %131 = vector.broadcast %123 : vector<16x1xf32> to vector<16x32xf32>
    %132 = arith.subf %117, %131 : vector<16x32xf32>
    %cst_76 = arith.constant 9.99999974E-6 : f32
    %133 = vector.broadcast %cst_76 : f32 to vector<16x1xf32>
    %134 = arith.addf %130, %133 : vector<16x1xf32>
    %135 = math.rsqrt %134 : vector<16x1xf32>
    %136 = vector.broadcast %135 : vector<16x1xf32> to vector<16x32xf32>
    %137 = arith.mulf %132, %136 : vector<16x32xf32>
    %138 = vector.broadcast %118 : vector<1x32xf32> to vector<16x32xf32>
    %139 = arith.mulf %137, %138 : vector<16x32xf32>
    %140 = vector.broadcast %119 : vector<1x32xf32> to vector<16x32xf32>
    %141 = arith.addf %139, %140 : vector<16x32xf32>
    %c16 = arith.constant 16 : index
    %c0_77 = arith.constant 0 : index
    %c0_78 = arith.constant 0 : index
    %142 = vector.load %arg2[%c16, %c0_77, %c0_78] : memref<32x32x8xf32, #tpu.memory_space<vmem>>, vector<1x32x8xf32>
    %143 = vector.shape_cast %142 : vector<1x32x8xf32> to vector<32x8xf32>
    %cst_79 = arith.constant dense<0.000000e+00> : vector<16x8xf32>
    %144 = tpu.matmul %141, %143, %cst_79 {dimension_numbers = #tpu.dot_dimension_numbers<[1], [0], [0], [1], [0, 0, 1, 1], [], []>} : vector<16x32xf32>, vector<32x8xf32>, vector<16x8xf32> -> vector<16x8xf32>
    %c17 = arith.constant 17 : index
    %c0_80 = arith.constant 0 : index
    %c0_81 = arith.constant 0 : index
    %145 = vector.load %arg2[%c17, %c0_80, %c0_81] : memref<32x32x8xf32, #tpu.memory_space<vmem>>, vector<1x32x8xf32>
    %146 = vector.shape_cast %145 : vector<1x32x8xf32> to vector<32x8xf32>
    %cst_82 = arith.constant dense<0.000000e+00> : vector<16x8xf32>
    %147 = tpu.matmul %141, %146, %cst_82 {dimension_numbers = #tpu.dot_dimension_numbers<[1], [0], [0], [1], [0, 0, 1, 1], [], []>} : vector<16x32xf32>, vector<32x8xf32>, vector<16x8xf32> -> vector<16x8xf32>
    %c18 = arith.constant 18 : index
    %c0_83 = arith.constant 0 : index
    %c0_84 = arith.constant 0 : index
    %148 = vector.load %arg2[%c18, %c0_83, %c0_84] : memref<32x32x8xf32, #tpu.memory_space<vmem>>, vector<1x32x8xf32>
    %149 = vector.shape_cast %148 : vector<1x32x8xf32> to vector<32x8xf32>
    %cst_85 = arith.constant dense<0.000000e+00> : vector<16x8xf32>
    %150 = tpu.matmul %141, %149, %cst_85 {dimension_numbers = #tpu.dot_dimension_numbers<[1], [0], [0], [1], [0, 0, 1, 1], [], []>} : vector<16x32xf32>, vector<32x8xf32>, vector<16x8xf32> -> vector<16x8xf32>
    %c19 = arith.constant 19 : index
    %c0_86 = arith.constant 0 : index
    %c0_87 = arith.constant 0 : index
    %151 = vector.load %arg2[%c19, %c0_86, %c0_87] : memref<32x32x8xf32, #tpu.memory_space<vmem>>, vector<1x32x8xf32>
    %152 = vector.shape_cast %151 : vector<1x32x8xf32> to vector<32x8xf32>
    %cst_88 = arith.constant dense<0.000000e+00> : vector<16x8xf32>
    %153 = tpu.matmul %141, %152, %cst_88 {dimension_numbers = #tpu.dot_dimension_numbers<[1], [0], [0], [1], [0, 0, 1, 1], [], []>} : vector<16x32xf32>, vector<32x8xf32>, vector<16x8xf32> -> vector<16x8xf32>
    %154 = tpu.concatenate %144, %147, %150, %153 in 0 : vector<16x8xf32>, vector<16x8xf32>, vector<16x8xf32>, vector<16x8xf32> -> vector<64x8xf32>
    %c20 = arith.constant 20 : index
    %c0_89 = arith.constant 0 : index
    %c0_90 = arith.constant 0 : index
    %155 = vector.load %arg2[%c20, %c0_89, %c0_90] : memref<32x32x8xf32, #tpu.memory_space<vmem>>, vector<1x32x8xf32>
    %156 = vector.shape_cast %155 : vector<1x32x8xf32> to vector<32x8xf32>
    %cst_91 = arith.constant dense<0.000000e+00> : vector<16x8xf32>
    %157 = tpu.matmul %141, %156, %cst_91 {dimension_numbers = #tpu.dot_dimension_numbers<[1], [0], [0], [1], [0, 0, 1, 1], [], []>} : vector<16x32xf32>, vector<32x8xf32>, vector<16x8xf32> -> vector<16x8xf32>
    %c21 = arith.constant 21 : index
    %c0_92 = arith.constant 0 : index
    %c0_93 = arith.constant 0 : index
    %158 = vector.load %arg2[%c21, %c0_92, %c0_93] : memref<32x32x8xf32, #tpu.memory_space<vmem>>, vector<1x32x8xf32>
    %159 = vector.shape_cast %158 : vector<1x32x8xf32> to vector<32x8xf32>
    %cst_94 = arith.constant dense<0.000000e+00> : vector<16x8xf32>
    %160 = tpu.matmul %141, %159, %cst_94 {dimension_numbers = #tpu.dot_dimension_numbers<[1], [0], [0], [1], [0, 0, 1, 1], [], []>} : vector<16x32xf32>, vector<32x8xf32>, vector<16x8xf32> -> vector<16x8xf32>
    %c22 = arith.constant 22 : index
    %c0_95 = arith.constant 0 : index
    %c0_96 = arith.constant 0 : index
    %161 = vector.load %arg2[%c22, %c0_95, %c0_96] : memref<32x32x8xf32, #tpu.memory_space<vmem>>, vector<1x32x8xf32>
    %162 = vector.shape_cast %161 : vector<1x32x8xf32> to vector<32x8xf32>
    %cst_97 = arith.constant dense<0.000000e+00> : vector<16x8xf32>
    %163 = tpu.matmul %141, %162, %cst_97 {dimension_numbers = #tpu.dot_dimension_numbers<[1], [0], [0], [1], [0, 0, 1, 1], [], []>} : vector<16x32xf32>, vector<32x8xf32>, vector<16x8xf32> -> vector<16x8xf32>
    %c23 = arith.constant 23 : index
    %c0_98 = arith.constant 0 : index
    %c0_99 = arith.constant 0 : index
    %164 = vector.load %arg2[%c23, %c0_98, %c0_99] : memref<32x32x8xf32, #tpu.memory_space<vmem>>, vector<1x32x8xf32>
    %165 = vector.shape_cast %164 : vector<1x32x8xf32> to vector<32x8xf32>
    %cst_100 = arith.constant dense<0.000000e+00> : vector<16x8xf32>
    %166 = tpu.matmul %141, %165, %cst_100 {dimension_numbers = #tpu.dot_dimension_numbers<[1], [0], [0], [1], [0, 0, 1, 1], [], []>} : vector<16x32xf32>, vector<32x8xf32>, vector<16x8xf32> -> vector<16x8xf32>
    %167 = tpu.concatenate %157, %160, %163, %166 in 0 : vector<16x8xf32>, vector<16x8xf32>, vector<16x8xf32>, vector<16x8xf32> -> vector<64x8xf32>
    %c24 = arith.constant 24 : index
    %c0_101 = arith.constant 0 : index
    %c0_102 = arith.constant 0 : index
    %168 = vector.load %arg2[%c24, %c0_101, %c0_102] : memref<32x32x8xf32, #tpu.memory_space<vmem>>, vector<1x32x8xf32>
    %169 = vector.shape_cast %168 : vector<1x32x8xf32> to vector<32x8xf32>
    %cst_103 = arith.constant dense<0.000000e+00> : vector<16x8xf32>
    %170 = tpu.matmul %141, %169, %cst_103 {dimension_numbers = #tpu.dot_dimension_numbers<[1], [0], [0], [1], [0, 0, 1, 1], [], []>} : vector<16x32xf32>, vector<32x8xf32>, vector<16x8xf32> -> vector<16x8xf32>
    %c25 = arith.constant 25 : index
    %c0_104 = arith.constant 0 : index
    %c0_105 = arith.constant 0 : index
    %171 = vector.load %arg2[%c25, %c0_104, %c0_105] : memref<32x32x8xf32, #tpu.memory_space<vmem>>, vector<1x32x8xf32>
    %172 = vector.shape_cast %171 : vector<1x32x8xf32> to vector<32x8xf32>
    %cst_106 = arith.constant dense<0.000000e+00> : vector<16x8xf32>
    %173 = tpu.matmul %141, %172, %cst_106 {dimension_numbers = #tpu.dot_dimension_numbers<[1], [0], [0], [1], [0, 0, 1, 1], [], []>} : vector<16x32xf32>, vector<32x8xf32>, vector<16x8xf32> -> vector<16x8xf32>
    %c26 = arith.constant 26 : index
    %c0_107 = arith.constant 0 : index
    %c0_108 = arith.constant 0 : index
    %174 = vector.load %arg2[%c26, %c0_107, %c0_108] : memref<32x32x8xf32, #tpu.memory_space<vmem>>, vector<1x32x8xf32>
    %175 = vector.shape_cast %174 : vector<1x32x8xf32> to vector<32x8xf32>
    %cst_109 = arith.constant dense<0.000000e+00> : vector<16x8xf32>
    %176 = tpu.matmul %141, %175, %cst_109 {dimension_numbers = #tpu.dot_dimension_numbers<[1], [0], [0], [1], [0, 0, 1, 1], [], []>} : vector<16x32xf32>, vector<32x8xf32>, vector<16x8xf32> -> vector<16x8xf32>
    %c27 = arith.constant 27 : index
    %c0_110 = arith.constant 0 : index
    %c0_111 = arith.constant 0 : index
    %177 = vector.load %arg2[%c27, %c0_110, %c0_111] : memref<32x32x8xf32, #tpu.memory_space<vmem>>, vector<1x32x8xf32>
    %178 = vector.shape_cast %177 : vector<1x32x8xf32> to vector<32x8xf32>
    %cst_112 = arith.constant dense<0.000000e+00> : vector<16x8xf32>
    %179 = tpu.matmul %141, %178, %cst_112 {dimension_numbers = #tpu.dot_dimension_numbers<[1], [0], [0], [1], [0, 0, 1, 1], [], []>} : vector<16x32xf32>, vector<32x8xf32>, vector<16x8xf32> -> vector<16x8xf32>
    %180 = tpu.concatenate %170, %173, %176, %179 in 0 : vector<16x8xf32>, vector<16x8xf32>, vector<16x8xf32>, vector<16x8xf32> -> vector<64x8xf32>
    %cst_113 = arith.constant dense<0.000000e+00> : vector<64x64xf32>
    %181 = tpu.matmul %154, %167, %cst_113 {dimension_numbers = #tpu.dot_dimension_numbers<[1], [1], [0], [0], [0, 0, 1, 0], [], []>} : vector<64x8xf32>, vector<64x8xf32>, vector<64x64xf32> -> vector<64x64xf32>
    %182 = arith.addf %181, %1 : vector<64x64xf32>
    %cst_114 = arith.constant dense<0xFF800000> : vector<64xf32>
    %183 = vector.multi_reduction <maximumf>, %182, %cst_114 [1] : vector<64x64xf32> to vector<64xf32>
    %184 = vector.shape_cast %183 : vector<64xf32> to vector<64x1xf32>
    %185 = vector.broadcast %184 : vector<64x1xf32> to vector<64x64xf32>
    %186 = arith.subf %182, %185 : vector<64x64xf32>
    %187 = math.exp %186 : vector<64x64xf32>
    %cst_115 = arith.constant dense<0.000000e+00> : vector<64xf32>
    %188 = vector.multi_reduction <add>, %187, %cst_115 [1] : vector<64x64xf32> to vector<64xf32>
    %189 = vector.shape_cast %188 : vector<64xf32> to vector<64x1xf32>
    %190 = tpu.reciprocal %189 {approx = true} : vector<64x1xf32> -> vector<64x1xf32>
    %191 = vector.broadcast %190 : vector<64x1xf32> to vector<64x64xf32>
    %192 = arith.mulf %187, %191 : vector<64x64xf32>
    %cst_116 = arith.constant dense<0.000000e+00> : vector<64x8xf32>
    %193 = tpu.matmul %192, %180, %cst_116 {dimension_numbers = #tpu.dot_dimension_numbers<[1], [0], [0], [1], [0, 0, 1, 1], [], []>} : vector<64x64xf32>, vector<64x8xf32>, vector<64x8xf32> -> vector<64x8xf32>
    %c1_117 = arith.constant 1 : index
    %c0_118 = arith.constant 0 : index
    %c0_119 = arith.constant 0 : index
    %194 = vector.load %arg4[%c1_117, %c0_118, %c0_119] : memref<2x7x128xf32, #tpu.memory_space<vmem>>, vector<1x7x128xf32>
    %195 = vector.shape_cast %194 : vector<1x7x128xf32> to vector<7x128xf32>
    %196 = vector.extract_strided_slice %195 {offsets = [0, 0], sizes = [1, 32], strides = [1, 1]} : vector<7x128xf32> to vector<1x32xf32>
    %197 = vector.extract_strided_slice %193 {offsets = [0, 0], sizes = [16, 8], strides = [1, 1]} : vector<64x8xf32> to vector<16x8xf32>
    %c28 = arith.constant 28 : index
    %c0_120 = arith.constant 0 : index
    %c0_121 = arith.constant 0 : index
    %198 = vector.load %arg2[%c28, %c0_120, %c0_121] : memref<32x32x8xf32, #tpu.memory_space<vmem>>, vector<1x32x8xf32>
    %199 = vector.shape_cast %198 : vector<1x32x8xf32> to vector<32x8xf32>
    %cst_122 = arith.constant dense<0.000000e+00> : vector<16x32xf32>
    %200 = tpu.matmul %197, %199, %cst_122 {dimension_numbers = #tpu.dot_dimension_numbers<[1], [1], [0], [0], [0, 0, 1, 0], [], []>} : vector<16x8xf32>, vector<32x8xf32>, vector<16x32xf32> -> vector<16x32xf32>
    %201 = vector.broadcast %196 : vector<1x32xf32> to vector<16x32xf32>
    %202 = arith.addf %201, %200 : vector<16x32xf32>
    %203 = vector.extract_strided_slice %193 {offsets = [16, 0], sizes = [16, 8], strides = [1, 1]} : vector<64x8xf32> to vector<16x8xf32>
    %c29 = arith.constant 29 : index
    %c0_123 = arith.constant 0 : index
    %c0_124 = arith.constant 0 : index
    %204 = vector.load %arg2[%c29, %c0_123, %c0_124] : memref<32x32x8xf32, #tpu.memory_space<vmem>>, vector<1x32x8xf32>
    %205 = vector.shape_cast %204 : vector<1x32x8xf32> to vector<32x8xf32>
    %cst_125 = arith.constant dense<0.000000e+00> : vector<16x32xf32>
    %206 = tpu.matmul %203, %205, %cst_125 {dimension_numbers = #tpu.dot_dimension_numbers<[1], [1], [0], [0], [0, 0, 1, 0], [], []>} : vector<16x8xf32>, vector<32x8xf32>, vector<16x32xf32> -> vector<16x32xf32>
    %207 = arith.addf %202, %206 : vector<16x32xf32>
    %208 = vector.extract_strided_slice %193 {offsets = [32, 0], sizes = [16, 8], strides = [1, 1]} : vector<64x8xf32> to vector<16x8xf32>
    %c30 = arith.constant 30 : index
    %c0_126 = arith.constant 0 : index
    %c0_127 = arith.constant 0 : index
    %209 = vector.load %arg2[%c30, %c0_126, %c0_127] : memref<32x32x8xf32, #tpu.memory_space<vmem>>, vector<1x32x8xf32>
    %210 = vector.shape_cast %209 : vector<1x32x8xf32> to vector<32x8xf32>
    %cst_128 = arith.constant dense<0.000000e+00> : vector<16x32xf32>
    %211 = tpu.matmul %208, %210, %cst_128 {dimension_numbers = #tpu.dot_dimension_numbers<[1], [1], [0], [0], [0, 0, 1, 0], [], []>} : vector<16x8xf32>, vector<32x8xf32>, vector<16x32xf32> -> vector<16x32xf32>
    %212 = arith.addf %207, %211 : vector<16x32xf32>
    %213 = vector.extract_strided_slice %193 {offsets = [48, 0], sizes = [16, 8], strides = [1, 1]} : vector<64x8xf32> to vector<16x8xf32>
    %c31 = arith.constant 31 : index
    %c0_129 = arith.constant 0 : index
    %c0_130 = arith.constant 0 : index
    %214 = vector.load %arg2[%c31, %c0_129, %c0_130] : memref<32x32x8xf32, #tpu.memory_space<vmem>>, vector<1x32x8xf32>
    %215 = vector.shape_cast %214 : vector<1x32x8xf32> to vector<32x8xf32>
    %cst_131 = arith.constant dense<0.000000e+00> : vector<16x32xf32>
    %216 = tpu.matmul %213, %215, %cst_131 {dimension_numbers = #tpu.dot_dimension_numbers<[1], [1], [0], [0], [0, 0, 1, 0], [], []>} : vector<16x8xf32>, vector<32x8xf32>, vector<16x32xf32> -> vector<16x32xf32>
    %217 = arith.addf %212, %216 : vector<16x32xf32>
    %218 = arith.addf %217, %141 : vector<16x32xf32>
    %219 = vector.extract_strided_slice %195 {offsets = [1, 0], sizes = [1, 32], strides = [1, 1]} : vector<7x128xf32> to vector<1x32xf32>
    %220 = vector.extract_strided_slice %195 {offsets = [2, 0], sizes = [1, 32], strides = [1, 1]} : vector<7x128xf32> to vector<1x32xf32>
    %cst_132 = arith.constant dense<0.000000e+00> : vector<16xf32>
    %221 = vector.multi_reduction <add>, %218, %cst_132 [1] : vector<16x32xf32> to vector<16xf32>
    %222 = vector.shape_cast %221 : vector<16xf32> to vector<16x1xf32>
    %cst_133 = arith.constant 3.200000e+01 : f32
    %223 = vector.broadcast %cst_133 : f32 to vector<16x1xf32>
    %224 = arith.divf %222, %223 : vector<16x1xf32>
    %225 = vector.broadcast %224 : vector<16x1xf32> to vector<16x32xf32>
    %226 = arith.subf %218, %225 : vector<16x32xf32>
    %227 = arith.mulf %226, %226 : vector<16x32xf32>
    %cst_134 = arith.constant dense<0.000000e+00> : vector<16xf32>
    %228 = vector.multi_reduction <add>, %227, %cst_134 [1] : vector<16x32xf32> to vector<16xf32>
    %229 = vector.shape_cast %228 : vector<16xf32> to vector<16x1xf32>
    %cst_135 = arith.constant 3.200000e+01 : f32
    %230 = vector.broadcast %cst_135 : f32 to vector<16x1xf32>
    %231 = arith.divf %229, %230 : vector<16x1xf32>
    %232 = vector.broadcast %224 : vector<16x1xf32> to vector<16x32xf32>
    %233 = arith.subf %218, %232 : vector<16x32xf32>
    %cst_136 = arith.constant 9.99999974E-6 : f32
    %234 = vector.broadcast %cst_136 : f32 to vector<16x1xf32>
    %235 = arith.addf %231, %234 : vector<16x1xf32>
    %236 = math.rsqrt %235 : vector<16x1xf32>
    %237 = vector.broadcast %236 : vector<16x1xf32> to vector<16x32xf32>
    %238 = arith.mulf %233, %237 : vector<16x32xf32>
    %239 = vector.broadcast %219 : vector<1x32xf32> to vector<16x32xf32>
    %240 = arith.mulf %238, %239 : vector<16x32xf32>
    %241 = vector.broadcast %220 : vector<1x32xf32> to vector<16x32xf32>
    %242 = arith.addf %240, %241 : vector<16x32xf32>
    %c2_137 = arith.constant 2 : index
    %c0_138 = arith.constant 0 : index
    %c0_139 = arith.constant 0 : index
    %243 = vector.load %arg3[%c2_137, %c0_138, %c0_139] : memref<4x32x128xf32, #tpu.memory_space<vmem>>, vector<1x32x128xf32>
    %244 = vector.shape_cast %243 : vector<1x32x128xf32> to vector<32x128xf32>
    %cst_140 = arith.constant dense<0.000000e+00> : vector<16x128xf32>
    %245 = tpu.matmul %242, %244, %cst_140 {dimension_numbers = #tpu.dot_dimension_numbers<[1], [0], [0], [1], [0, 0, 1, 1], [], []>} : vector<16x32xf32>, vector<32x128xf32>, vector<16x128xf32> -> vector<16x128xf32>
    %246 = vector.extract_strided_slice %195 {offsets = [3, 0], sizes = [1, 128], strides = [1, 1]} : vector<7x128xf32> to vector<1x128xf32>
    %247 = vector.broadcast %246 : vector<1x128xf32> to vector<16x128xf32>
    %248 = arith.addf %245, %247 : vector<16x128xf32>
    %cst_141 = arith.constant 0.000000e+00 : f32
    %249 = vector.broadcast %cst_141 : f32 to vector<16x128xf32>
    %250 = arith.maximumf %248, %249 : vector<16x128xf32>
    %c3_142 = arith.constant 3 : index
    %c0_143 = arith.constant 0 : index
    %c0_144 = arith.constant 0 : index
    %251 = vector.load %arg3[%c3_142, %c0_143, %c0_144] : memref<4x32x128xf32, #tpu.memory_space<vmem>>, vector<1x32x128xf32>
    %252 = vector.shape_cast %251 : vector<1x32x128xf32> to vector<32x128xf32>
    %cst_145 = arith.constant dense<0.000000e+00> : vector<16x32xf32>
    %253 = tpu.matmul %250, %252, %cst_145 {dimension_numbers = #tpu.dot_dimension_numbers<[1], [1], [0], [0], [0, 0, 1, 0], [], []>} : vector<16x128xf32>, vector<32x128xf32>, vector<16x32xf32> -> vector<16x32xf32>
    %254 = vector.extract_strided_slice %195 {offsets = [4, 0], sizes = [1, 32], strides = [1, 1]} : vector<7x128xf32> to vector<1x32xf32>
    %255 = vector.broadcast %254 : vector<1x32xf32> to vector<16x32xf32>
    %256 = arith.addf %253, %255 : vector<16x32xf32>
    %257 = arith.addf %256, %242 : vector<16x32xf32>
    %258 = vector.extract_strided_slice %195 {offsets = [5, 0], sizes = [1, 32], strides = [1, 1]} : vector<7x128xf32> to vector<1x32xf32>
    %259 = vector.extract_strided_slice %195 {offsets = [6, 0], sizes = [1, 32], strides = [1, 1]} : vector<7x128xf32> to vector<1x32xf32>
    %cst_146 = arith.constant dense<0.000000e+00> : vector<16xf32>
    %260 = vector.multi_reduction <add>, %257, %cst_146 [1] : vector<16x32xf32> to vector<16xf32>
    %261 = vector.shape_cast %260 : vector<16xf32> to vector<16x1xf32>
    %cst_147 = arith.constant 3.200000e+01 : f32
    %262 = vector.broadcast %cst_147 : f32 to vector<16x1xf32>
    %263 = arith.divf %261, %262 : vector<16x1xf32>
    %264 = vector.broadcast %263 : vector<16x1xf32> to vector<16x32xf32>
    %265 = arith.subf %257, %264 : vector<16x32xf32>
    %266 = arith.mulf %265, %265 : vector<16x32xf32>
    %cst_148 = arith.constant dense<0.000000e+00> : vector<16xf32>
    %267 = vector.multi_reduction <add>, %266, %cst_148 [1] : vector<16x32xf32> to vector<16xf32>
    %268 = vector.shape_cast %267 : vector<16xf32> to vector<16x1xf32>
    %cst_149 = arith.constant 3.200000e+01 : f32
    %269 = vector.broadcast %cst_149 : f32 to vector<16x1xf32>
    %270 = arith.divf %268, %269 : vector<16x1xf32>
    %271 = vector.broadcast %263 : vector<16x1xf32> to vector<16x32xf32>
    %272 = arith.subf %257, %271 : vector<16x32xf32>
    %cst_150 = arith.constant 9.99999974E-6 : f32
    %273 = vector.broadcast %cst_150 : f32 to vector<16x1xf32>
    %274 = arith.addf %270, %273 : vector<16x1xf32>
    %275 = math.rsqrt %274 : vector<16x1xf32>
    %276 = vector.broadcast %275 : vector<16x1xf32> to vector<16x32xf32>
    %277 = arith.mulf %272, %276 : vector<16x32xf32>
    %278 = vector.broadcast %258 : vector<1x32xf32> to vector<16x32xf32>
    %279 = arith.mulf %277, %278 : vector<16x32xf32>
    %280 = vector.broadcast %259 : vector<1x32xf32> to vector<16x32xf32>
    %281 = arith.addf %279, %280 : vector<16x32xf32>
    %c0_151 = arith.constant 0 : index
    %c0_152 = arith.constant 0 : index
    %282 = vector.load %arg5[%c0_151, %c0_152] : memref<16x32xf32, #tpu.memory_space<vmem>>, vector<16x32xf32>
    tpu.vector_store %arg5[%c0_151, %c0_152], %281 {strides = array<i32>} : memref<16x32xf32, #tpu.memory_space<vmem>>, vector<16x32xf32>,
    return
  }
}

</mosaic_0001>

<llo_original>
// kernel: encoder_forward.1
$region0: #{encoder_forward.1}
  #allocation0 [shape = 'u32[]', space=smem, size = 0x4, offset = 0x4, fixed_abs, tag = 'smem constant byte address 0x4 - core index']
  #allocation1 [shape = 'u32[72,128]{1,0:T(1,128)}', space=vmem, size = 0x9000, scoped, tag = 'internal scratch']
  %s0 = inlined_call_operand.vmem [shape: f32[16,32], index: 0, kind: input, shape index: {}]
  %s1 = inlined_call_operand.vmem [shape: f32[64,64], index: 1, kind: input, shape index: {}]
  %s2 = inlined_call_operand.vmem [shape: f32[32,32,8], index: 2, kind: input, shape index: {}]
  %s3 = inlined_call_operand.vmem [shape: f32[4,32,128], index: 3, kind: input, shape index: {}]
  %s4 = inlined_call_operand.vmem [shape: f32[2,7,128], index: 4, kind: input, shape index: {}]
  %s5 = inlined_call_operand.hbm [shape: f32[16,32], index: 5, kind: output, shape index: {}]
  %s6 = sld [smem:[#allocation0]]
  $region30: #{encoder_forward.1} parent=0
    _
  %s8 = ssub.s32 1, %s6
  %s9 = scalar_select 0, %s8, %s6
  $region1: #{encoder_forward.1} parent=0
    #allocation2 [shape = 'u8[8192]{0}', space=vmem, size = 0x2000, scoped, tag = 'output window, operand 0, single buffered']
    #allocation3 [shape = 's32[1]{0}', space=sflag, size = 0x4, scoped, tag = 'scoped memory for encoder_forward.1']
    %10 = vsyncpa [#allocation3], 0
    // Predicated region
    $region2: #{encoder_forward.1} parent=1 // pred_check
      _
    $region3: #{encoder_forward.1} parent=1 // pred_check_branch
      %12 = sbr.rel (0) target = $region5
    $region4: #{encoder_forward.1} parent=1 // pred_region
      _
    $region5: #{encoder_forward.1} parent=1 // pred_fallthru
      _
    // Predicated region
    $region6: #{encoder_forward.1} parent=1 // pred_check
      _
    $region7: #{encoder_forward.1} parent=1 // pred_check_branch
      %14 = sbr.rel (0) target = $region9
    $region8: #{encoder_forward.1} parent=1 // pred_region
      _
    $region9: #{encoder_forward.1} parent=1 // pred_fallthru
      _
    // Predicated region
    $region10: #{encoder_forward.1} parent=1 // pred_check
      _
    $region11: #{encoder_forward.1} parent=1 // pred_check_branch
      %16 = sbr.rel (0) target = $region13
    $region12: #{encoder_forward.1} parent=1 // pred_region
      _
    $region13: #{encoder_forward.1} parent=1 // pred_fallthru
      _
    // Predicated region
    $region14: #{encoder_forward.1} parent=1 // pred_check
      _
    $region15: #{encoder_forward.1} parent=1 // pred_check_branch
      %18 = sbr.rel (0) target = $region17
    $region16: #{encoder_forward.1} parent=1 // pred_region
      _
    $region17: #{encoder_forward.1} parent=1 // pred_fallthru
      _
    // Predicated region
    $region18: #{encoder_forward.1} parent=1 // pred_check
      _
    $region19: #{encoder_forward.1} parent=1 // pred_check_branch
      %20 = sbr.rel (0) target = $region21
    $region20: #{encoder_forward.1} parent=1 // pred_region
      _
    $region21: #{encoder_forward.1} parent=1 // pred_fallthru
      _
    %v21 = vld [vmem:[%s0] sm:$0xff]
    %v22 = vld [vmem:[%s0 + $0x8] sm:$0xff]
    %v23 = vld [vmem:[%s1] sm:$0xff]
    %v24 = vld [vmem:[%s1 + $0x8] sm:$0xff]
    %v25 = vld [vmem:[%s1 + $0x10] sm:$0xff]
    %v26 = vld [vmem:[%s1 + $0x18] sm:$0xff]
    %v27 = vld [vmem:[%s1 + $0x20] sm:$0xff]
    %v28 = vld [vmem:[%s1 + $0x28] sm:$0xff]
    %v29 = vld [vmem:[%s1 + $0x30] sm:$0xff]
    %v30 = vld [vmem:[%s1 + $0x38] sm:$0xff]
    %v31 = vld [vmem:[%s2] sm:$0xff]
    %v32 = vld [vmem:[%s2 + $0x8] sm:$0xff]
    %v33 = vld [vmem:[%s2 + $0x10] sm:$0xff]
    %v34 = vld [vmem:[%s2 + $0x18] sm:$0xff]
    %vm35 = vcmask 261120
    %v37 = vsel %vm35, %v21, 0
    %v40 = vsel %vm35, %v22, 0
    %42 = vmatpush.msra.mxu0 0.0
    %43 = vmatpush.msra.mxu0 0.0
    %44 = vmatpush.msra.mxu0 0.0
    %45 = vmatpush.msra.mxu0 0.0
    %46 = vmatpush.msra.mxu0 0.0
    %47 = vmatpush.msra.mxu0 0.0
    %48 = vmatpush.msra.mxu0 0.0
    %49 = vmatpush.msra.mxu0 0.0
    %50 = vmatpush.msra.mxu0 0.0
    %51 = vmatpush.msra.mxu0 0.0
    %52 = vmatpush.msra.mxu0 0.0
    %53 = vmatpush.msra.mxu0 0.0
    %54 = vmatpush.msra.mxu0 %v34
    %55 = vmatpush.msra.mxu0 %v33
    %56 = vmatpush.msra.mxu0 %v32
    %57 = vmatpush.msra.mxu0 %v31
    %58 = vmatmul.f32.gmra.mxu0 %v37
    %v59 = vpop.f32.mrf.mxu0
    %v60 = vadd.f32 0.0, %v59
    %61 = vmatmul.f32.gmra.mxu0 %v40
    %v62 = vpop.f32.mrf.mxu0
    %v63 = vadd.f32 0.0, %v62
    %64 = vdwg.mxu0
    %s65 = scalar_lea.vmem %s2, 32
    %v66 = vld [vmem:[%s65] sm:$0xff]
    %v67 = vld [vmem:[%s65 + $0x8] sm:$0xff]
    %v68 = vld [vmem:[%s65 + $0x10] sm:$0xff]
    %v69 = vld [vmem:[%s65 + $0x18] sm:$0xff]
    %70 = vmatpush.msra.mxu0 0.0
    %71 = vmatpush.msra.mxu0 0.0
    %72 = vmatpush.msra.mxu0 0.0
    %73 = vmatpush.msra.mxu0 0.0
    %74 = vmatpush.msra.mxu0 0.0
    %75 = vmatpush.msra.mxu0 0.0
    %76 = vmatpush.msra.mxu0 0.0
    %77 = vmatpush.msra.mxu0 0.0
    %78 = vmatpush.msra.mxu0 0.0
    %79 = vmatpush.msra.mxu0 0.0
    %80 = vmatpush.msra.mxu0 0.0
    %81 = vmatpush.msra.mxu0 0.0
    %82 = vmatpush.msra.mxu0 %v69
    %83 = vmatpush.msra.mxu0 %v68
    %84 = vmatpush.msra.mxu0 %v67
    %85 = vmatpush.msra.mxu0 %v66
    %86 = vmatmul.f32.gmra.mxu0 %v37
    %v87 = vpop.f32.mrf.mxu0
    %v88 = vadd.f32 0.0, %v87
    %89 = vmatmul.f32.gmra.mxu0 %v40
    %v90 = vpop.f32.mrf.mxu0
    %v91 = vadd.f32 0.0, %v90
    %92 = vdwg.mxu0
    %s93 = scalar_lea.vmem %s2, 64
    %v94 = vld [vmem:[%s93] sm:$0xff]
    %v95 = vld [vmem:[%s93 + $0x8] sm:$0xff]
    %v96 = vld [vmem:[%s93 + $0x10] sm:$0xff]
    %v97 = vld [vmem:[%s93 + $0x18] sm:$0xff]
    %98 = vmatpush.msra.mxu0 0.0
    %99 = vmatpush.msra.mxu0 0.0
    %100 = vmatpush.msra.mxu0 0.0
    %101 = vmatpush.msra.mxu0 0.0
    %102 = vmatpush.msra.mxu0 0.0
    %103 = vmatpush.msra.mxu0 0.0
    %104 = vmatpush.msra.mxu0 0.0
    %105 = vmatpush.msra.mxu0 0.0
    %106 = vmatpush.msra.mxu0 0.0
    %107 = vmatpush.msra.mxu0 0.0
    %108 = vmatpush.msra.mxu0 0.0
    %109 = vmatpush.msra.mxu0 0.0
    %110 = vmatpush.msra.mxu0 %v97
    %111 = vmatpush.msra.mxu0 %v96
    %112 = vmatpush.msra.mxu0 %v95
    %113 = vmatpush.msra.mxu0 %v94
    %114 = vmatmul.f32.gmra.mxu0 %v37
    %v115 = vpop.f32.mrf.mxu0
    %v116 = vadd.f32 0.0, %v115
    %117 = vmatmul.f32.gmra.mxu0 %v40
    %v118 = vpop.f32.mrf.mxu0
    %v119 = vadd.f32 0.0, %v118
    %120 = vdwg.mxu0
    %s121 = scalar_lea.vmem %s2, 96
    %v122 = vld [vmem:[%s121] sm:$0xff]
    %v123 = vld [vmem:[%s121 + $0x8] sm:$0xff]
    %v124 = vld [vmem:[%s121 + $0x10] sm:$0xff]
    %v125 = vld [vmem:[%s121 + $0x18] sm:$0xff]
    %126 = vmatpush.msra.mxu0 0.0
    %127 = vmatpush.msra.mxu0 0.0
    %128 = vmatpush.msra.mxu0 0.0
    %129 = vmatpush.msra.mxu0 0.0
    %130 = vmatpush.msra.mxu0 0.0
    %131 = vmatpush.msra.mxu0 0.0
    %132 = vmatpush.msra.mxu0 0.0
    %133 = vmatpush.msra.mxu0 0.0
    %134 = vmatpush.msra.mxu0 0.0
    %135 = vmatpush.msra.mxu0 0.0
    %136 = vmatpush.msra.mxu0 0.0
    %137 = vmatpush.msra.mxu0 0.0
    %138 = vmatpush.msra.mxu0 %v125
    %139 = vmatpush.msra.mxu0 %v124
    %140 = vmatpush.msra.mxu0 %v123
    %141 = vmatpush.msra.mxu0 %v122
    %142 = vmatmul.f32.gmra.mxu0 %v37
    %v143 = vpop.f32.mrf.mxu0
    %v144 = vadd.f32 0.0, %v143
    %145 = vmatmul.f32.gmra.mxu0 %v40
    %v146 = vpop.f32.mrf.mxu0
    %v147 = vadd.f32 0.0, %v146
    %148 = vdwg.mxu0
    %s149 = scalar_lea.vmem %s2, 128
    %v150 = vld [vmem:[%s149] sm:$0xff]
    %v151 = vld [vmem:[%s149 + $0x8] sm:$0xff]
    %v152 = vld [vmem:[%s149 + $0x10] sm:$0xff]
    %v153 = vld [vmem:[%s149 + $0x18] sm:$0xff]
    %154 = vmatpush.msra.mxu0 0.0
    %155 = vmatpush.msra.mxu0 0.0
    %156 = vmatpush.msra.mxu0 0.0
    %157 = vmatpush.msra.mxu0 0.0
    %158 = vmatpush.msra.mxu0 0.0
    %159 = vmatpush.msra.mxu0 0.0
    %160 = vmatpush.msra.mxu0 0.0
    %161 = vmatpush.msra.mxu0 0.0
    %162 = vmatpush.msra.mxu0 0.0
    %163 = vmatpush.msra.mxu0 0.0
    %164 = vmatpush.msra.mxu0 0.0
    %165 = vmatpush.msra.mxu0 0.0
    %166 = vmatpush.msra.mxu0 %v153
    %167 = vmatpush.msra.mxu0 %v152
    %168 = vmatpush.msra.mxu0 %v151
    %169 = vmatpush.msra.mxu0 %v150
    %170 = vmatmul.f32.gmra.mxu0 %v37
    %v171 = vpop.f32.mrf.mxu0
    %v172 = vadd.f32 0.0, %v171
    %173 = vmatmul.f32.gmra.mxu0 %v40
    %v174 = vpop.f32.mrf.mxu0
    %v175 = vadd.f32 0.0, %v174
    %176 = vdwg.mxu0
    %s177 = scalar_lea.vmem %s2, 160
    %v178 = vld [vmem:[%s177] sm:$0xff]
    %v179 = vld [vmem:[%s177 + $0x8] sm:$0xff]
    %v180 = vld [vmem:[%s177 + $0x10] sm:$0xff]
    %v181 = vld [vmem:[%s177 + $0x18] sm:$0xff]
    %182 = vmatpush.msra.mxu0 0.0
    %183 = vmatpush.msra.mxu0 0.0
    %184 = vmatpush.msra.mxu0 0.0
    %185 = vmatpush.msra.mxu0 0.0
    %186 = vmatpush.msra.mxu0 0.0
    %187 = vmatpush.msra.mxu0 0.0
    %188 = vmatpush.msra.mxu0 0.0
    %189 = vmatpush.msra.mxu0 0.0
    %190 = vmatpush.msra.mxu0 0.0
    %191 = vmatpush.msra.mxu0 0.0
    %192 = vmatpush.msra.mxu0 0.0
    %193 = vmatpush.msra.mxu0 0.0
    %194 = vmatpush.msra.mxu0 %v181
    %195 = vmatpush.msra.mxu0 %v180
    %196 = vmatpush.msra.mxu0 %v179
    %197 = vmatpush.msra.mxu0 %v178
    %198 = vmatmul.f32.gmra.mxu0 %v37
    %v199 = vpop.f32.mrf.mxu0
    %v200 = vadd.f32 0.0, %v199
    %201 = vmatmul.f32.gmra.mxu0 %v40
    %v202 = vpop.f32.mrf.mxu0
    %v203 = vadd.f32 0.0, %v202
    %204 = vdwg.mxu0
    %s205 = scalar_lea.vmem %s2, 192
    %v206 = vld [vmem:[%s205] sm:$0xff]
    %v207 = vld [vmem:[%s205 + $0x8] sm:$0xff]
    %v208 = vld [vmem:[%s205 + $0x10] sm:$0xff]
    %v209 = vld [vmem:[%s205 + $0x18] sm:$0xff]
    %210 = vmatpush.msra.mxu0 0.0
    %211 = vmatpush.msra.mxu0 0.0
    %212 = vmatpush.msra.mxu0 0.0
    %213 = vmatpush.msra.mxu0 0.0
    %214 = vmatpush.msra.mxu0 0.0
    %215 = vmatpush.msra.mxu0 0.0
    %216 = vmatpush.msra.mxu0 0.0
    %217 = vmatpush.msra.mxu0 0.0
    %218 = vmatpush.msra.mxu0 0.0
    %219 = vmatpush.msra.mxu0 0.0
    %220 = vmatpush.msra.mxu0 0.0
    %221 = vmatpush.msra.mxu0 0.0
    %222 = vmatpush.msra.mxu0 %v209
    %223 = vmatpush.msra.mxu0 %v208
    %224 = vmatpush.msra.mxu0 %v207
    %225 = vmatpush.msra.mxu0 %v206
    %226 = vmatmul.f32.gmra.mxu0 %v37
    %v227 = vpop.f32.mrf.mxu0
    %v228 = vadd.f32 0.0, %v227
    %229 = vmatmul.f32.gmra.mxu0 %v40
    %v230 = vpop.f32.mrf.mxu0
    %v231 = vadd.f32 0.0, %v230
    %232 = vdwg.mxu0
    %s233 = scalar_lea.vmem %s2, 224
    %v234 = vld [vmem:[%s233] sm:$0xff]
    %v235 = vld [vmem:[%s233 + $0x8] sm:$0xff]
    %v236 = vld [vmem:[%s233 + $0x10] sm:$0xff]
    %v237 = vld [vmem:[%s233 + $0x18] sm:$0xff]
    %238 = vmatpush.msra.mxu0 0.0
    %239 = vmatpush.msra.mxu0 0.0
    %240 = vmatpush.msra.mxu0 0.0
    %241 = vmatpush.msra.mxu0 0.0
    %242 = vmatpush.msra.mxu0 0.0
    %243 = vmatpush.msra.mxu0 0.0
    %244 = vmatpush.msra.mxu0 0.0
    %245 = vmatpush.msra.mxu0 0.0
    %246 = vmatpush.msra.mxu0 0.0
    %247 = vmatpush.msra.mxu0 0.0
    %248 = vmatpush.msra.mxu0 0.0
    %249 = vmatpush.msra.mxu0 0.0
    %250 = vmatpush.msra.mxu0 %v237
    %251 = vmatpush.msra.mxu0 %v236
    %252 = vmatpush.msra.mxu0 %v235
    %253 = vmatpush.msra.mxu0 %v234
    %254 = vmatmul.f32.gmra.mxu0 %v37
    %v255 = vpop.f32.mrf.mxu0
    %v256 = vadd.f32 0.0, %v255
    %257 = vmatmul.f32.gmra.mxu0 %v40
    %v258 = vpop.f32.mrf.mxu0
    %v259 = vadd.f32 0.0, %v258
    %260 = vdwg.mxu0
    %s261 = scalar_lea.vmem %s2, 256
    %v262 = vld [vmem:[%s261] sm:$0xff]
    %v263 = vld [vmem:[%s261 + $0x8] sm:$0xff]
    %v264 = vld [vmem:[%s261 + $0x10] sm:$0xff]
    %v265 = vld [vmem:[%s261 + $0x18] sm:$0xff]
    %266 = vmatpush.msra.mxu0 0.0
    %267 = vmatpush.msra.mxu0 0.0
    %268 = vmatpush.msra.mxu0 0.0
    %269 = vmatpush.msra.mxu0 0.0
    %270 = vmatpush.msra.mxu0 0.0
    %271 = vmatpush.msra.mxu0 0.0
    %272 = vmatpush.msra.mxu0 0.0
    %273 = vmatpush.msra.mxu0 0.0
    %274 = vmatpush.msra.mxu0 0.0
    %275 = vmatpush.msra.mxu0 0.0
    %276 = vmatpush.msra.mxu0 0.0
    %277 = vmatpush.msra.mxu0 0.0
    %278 = vmatpush.msra.mxu0 %v265
    %279 = vmatpush.msra.mxu0 %v264
    %280 = vmatpush.msra.mxu0 %v263
    %281 = vmatpush.msra.mxu0 %v262
    %282 = vmatmul.f32.gmra.mxu0 %v37
    %v283 = vpop.f32.mrf.mxu0
    %v284 = vadd.f32 0.0, %v283
    %285 = vmatmul.f32.gmra.mxu0 %v40
    %v286 = vpop.f32.mrf.mxu0
    %v287 = vadd.f32 0.0, %v286
    %288 = vdwg.mxu0
    %s289 = scalar_lea.vmem %s2, 288
    %v290 = vld [vmem:[%s289] sm:$0xff]
    %v291 = vld [vmem:[%s289 + $0x8] sm:$0xff]
    %v292 = vld [vmem:[%s289 + $0x10] sm:$0xff]
    %v293 = vld [vmem:[%s289 + $0x18] sm:$0xff]
    %294 = vmatpush.msra.mxu0 0.0
    %295 = vmatpush.msra.mxu0 0.0
    %296 = vmatpush.msra.mxu0 0.0
    %297 = vmatpush.msra.mxu0 0.0
    %298 = vmatpush.msra.mxu0 0.0
    %299 = vmatpush.msra.mxu0 0.0
    %300 = vmatpush.msra.mxu0 0.0
    %301 = vmatpush.msra.mxu0 0.0
    %302 = vmatpush.msra.mxu0 0.0
    %303 = vmatpush.msra.mxu0 0.0
    %304 = vmatpush.msra.mxu0 0.0
    %305 = vmatpush.msra.mxu0 0.0
    %306 = vmatpush.msra.mxu0 %v293
    %307 = vmatpush.msra.mxu0 %v292
    %308 = vmatpush.msra.mxu0 %v291
    %309 = vmatpush.msra.mxu0 %v290
    %310 = vmatmul.f32.gmra.mxu0 %v37
    %v311 = vpop.f32.mrf.mxu0
    %v312 = vadd.f32 0.0, %v311
    %313 = vmatmul.f32.gmra.mxu0 %v40
    %v314 = vpop.f32.mrf.mxu0
    %v315 = vadd.f32 0.0, %v314
    %316 = vdwg.mxu0
    %s317 = scalar_lea.vmem %s2, 320
    %v318 = vld [vmem:[%s317] sm:$0xff]
    %v319 = vld [vmem:[%s317 + $0x8] sm:$0xff]
    %v320 = vld [vmem:[%s317 + $0x10] sm:$0xff]
    %v321 = vld [vmem:[%s317 + $0x18] sm:$0xff]
    %322 = vmatpush.msra.mxu0 0.0
    %323 = vmatpush.msra.mxu0 0.0
    %324 = vmatpush.msra.mxu0 0.0
    %325 = vmatpush.msra.mxu0 0.0
    %326 = vmatpush.msra.mxu0 0.0
    %327 = vmatpush.msra.mxu0 0.0
    %328 = vmatpush.msra.mxu0 0.0
    %329 = vmatpush.msra.mxu0 0.0
    %330 = vmatpush.msra.mxu0 0.0
    %331 = vmatpush.msra.mxu0 0.0
    %332 = vmatpush.msra.mxu0 0.0
    %333 = vmatpush.msra.mxu0 0.0
    %334 = vmatpush.msra.mxu0 %v321
    %335 = vmatpush.msra.mxu0 %v320
    %336 = vmatpush.msra.mxu0 %v319
    %337 = vmatpush.msra.mxu0 %v318
    %338 = vmatmul.f32.gmra.mxu0 %v37
    %v339 = vpop.f32.mrf.mxu0
    %v340 = vadd.f32 0.0, %v339
    %341 = vmatmul.f32.gmra.mxu0 %v40
    %v342 = vpop.f32.mrf.mxu0
    %v343 = vadd.f32 0.0, %v342
    %344 = vdwg.mxu0
    %s345 = scalar_lea.vmem %s2, 352
    %v346 = vld [vmem:[%s345] sm:$0xff]
    %v347 = vld [vmem:[%s345 + $0x8] sm:$0xff]
    %v348 = vld [vmem:[%s345 + $0x10] sm:$0xff]
    %v349 = vld [vmem:[%s345 + $0x18] sm:$0xff]
    %350 = vmatpush.msra.mxu0 0.0
    %351 = vmatpush.msra.mxu0 0.0
    %352 = vmatpush.msra.mxu0 0.0
    %353 = vmatpush.msra.mxu0 0.0
    %354 = vmatpush.msra.mxu0 0.0
    %355 = vmatpush.msra.mxu0 0.0
    %356 = vmatpush.msra.mxu0 0.0
    %357 = vmatpush.msra.mxu0 0.0
    %358 = vmatpush.msra.mxu0 0.0
    %359 = vmatpush.msra.mxu0 0.0
    %360 = vmatpush.msra.mxu0 0.0
    %361 = vmatpush.msra.mxu0 0.0
    %362 = vmatpush.msra.mxu0 %v349
    %363 = vmatpush.msra.mxu0 %v348
    %364 = vmatpush.msra.mxu0 %v347
    %365 = vmatpush.msra.mxu0 %v346
    %366 = vmatmul.f32.gmra.mxu0 %v37
    %v367 = vpop.f32.mrf.mxu0
    %v368 = vadd.f32 0.0, %v367
    %369 = vmatmul.f32.gmra.mxu0 %v40
    %v370 = vpop.f32.mrf.mxu0
    %v371 = vadd.f32 0.0, %v370
    %372 = vdwg.mxu0
    %vm373 = vcmask 64512
    %v375 = vsel %vm373, %v60, 0
    %v378 = vsel %vm373, %v63, 0
    %v381 = vsel %vm373, %v88, 0
    %v384 = vsel %vm373, %v91, 0
    %v387 = vsel %vm373, %v116, 0
    %v390 = vsel %vm373, %v119, 0
    %v393 = vsel %vm373, %v144, 0
    %v396 = vsel %vm373, %v147, 0
    %v399 = vsel %vm373, %v172, 0
    %v402 = vsel %vm373, %v175, 0
    %v405 = vsel %vm373, %v200, 0
    %v408 = vsel %vm373, %v203, 0
    %v411 = vsel %vm373, %v228, 0
    %v414 = vsel %vm373, %v231, 0
    %v417 = vsel %vm373, %v256, 0
    %v420 = vsel %vm373, %v259, 0
    %422 = vmatpush.xpose.msra.mxu0 0.0
    %423 = vmatpush.xpose.msra.mxu0 0.0
    %424 = vmatpush.xpose.msra.mxu0 0.0
    %425 = vmatpush.xpose.msra.mxu0 0.0
    %426 = vmatpush.xpose.msra.mxu0 0.0
    %427 = vmatpush.xpose.msra.mxu0 0.0
    %428 = vmatpush.xpose.msra.mxu0 0.0
    %429 = vmatpush.xpose.msra.mxu0 0.0
    %430 = vmatpush.xpose.msra.mxu0 %v420
    %431 = vmatpush.xpose.msra.mxu0 %v417
    %432 = vmatpush.xpose.msra.mxu0 %v414
    %433 = vmatpush.xpose.msra.mxu0 %v411
    %434 = vmatpush.xpose.msra.mxu0 %v408
    %435 = vmatpush.xpose.msra.mxu0 %v405
    %436 = vmatpush.xpose.msra.mxu0 %v402
    %437 = vmatpush.xpose.msra.mxu0 %v399
    %438 = vmatmul.f32.gmra.mxu0 %v375
    %v439 = vpop.f32.mrf.mxu0
    %v440 = vadd.f32 %v23, %v439
    %441 = vmatmul.f32.gmra.mxu0 %v378
    %v442 = vpop.f32.mrf.mxu0
    %v443 = vadd.f32 %v24, %v442
    %444 = vmatmul.f32.gmra.mxu0 %v381
    %v445 = vpop.f32.mrf.mxu0
    %v446 = vadd.f32 %v25, %v445
    %447 = vmatmul.f32.gmra.mxu0 %v384
    %v448 = vpop.f32.mrf.mxu0
    %v449 = vadd.f32 %v26, %v448
    %450 = vmatmul.f32.gmra.mxu0 %v387
    %v451 = vpop.f32.mrf.mxu0
    %v452 = vadd.f32 %v27, %v451
    %453 = vmatmul.f32.gmra.mxu0 %v390
    %v454 = vpop.f32.mrf.mxu0
    %v455 = vadd.f32 %v28, %v454
    %456 = vmatmul.f32.gmra.mxu0 %v393
    %v457 = vpop.f32.mrf.mxu0
    %v458 = vadd.f32 %v29, %v457
    %459 = vmatmul.f32.gmra.mxu0 %v396
    %v460 = vpop.f32.mrf.mxu0
    %v461 = vadd.f32 %v30, %v460
    %462 = vdwg.mxu0
    %vm463 = vcmask 523264
    %v464 = vsel %vm463, %v440, -inf
    %465 = vmax.xlane.f32.xlu0 %v464
    %v466 = vpop.xlane.xlu0 %465
    %v467 = vsel %vm463, %v443, -inf
    %468 = vmax.xlane.f32.xlu0 %v467
    %v469 = vpop.xlane.xlu0 %468
    %v470 = vsel %vm463, %v446, -inf
    %471 = vmax.xlane.f32.xlu0 %v470
    %v472 = vpop.xlane.xlu0 %471
    %v473 = vsel %vm463, %v449, -inf
    %474 = vmax.xlane.f32.xlu0 %v473
    %v475 = vpop.xlane.xlu0 %474
    %v476 = vsel %vm463, %v452, -inf
    %477 = vmax.xlane.f32.xlu0 %v476
    %v478 = vpop.xlane.xlu0 %477
    %v479 = vsel %vm463, %v455, -inf
    %480 = vmax.xlane.f32.xlu0 %v479
    %v481 = vpop.xlane.xlu0 %480
    %v482 = vsel %vm463, %v458, -inf
    %483 = vmax.xlane.f32.xlu0 %v482
    %v484 = vpop.xlane.xlu0 %483
    %v485 = vsel %vm463, %v461, -inf
    %486 = vmax.xlane.f32.xlu0 %v485
    %v487 = vpop.xlane.xlu0 %486
    %v488 = vsub.f32 %v440, %v466
    %v489 = vsub.f32 %v443, %v469
    %v490 = vsub.f32 %v446, %v472
    %v491 = vsub.f32 %v449, %v475
    %v492 = vsub.f32 %v452, %v478
    %v493 = vsub.f32 %v455, %v481
    %v494 = vsub.f32 %v458, %v484
    %v495 = vsub.f32 %v461, %v487
    %v496 = vmul.f32 %v488, 1.442695
    %v497 = vpow.pop %v496
    %v498 = vmul.f32 %v489, 1.442695
    %v499 = vpow.pop %v498
    %v500 = vmul.f32 %v490, 1.442695
    %v501 = vpow.pop %v500
    %v502 = vmul.f32 %v491, 1.442695
    %v503 = vpow.pop %v502
    %v504 = vmul.f32 %v492, 1.442695
    %v505 = vpow.pop %v504
    %v506 = vmul.f32 %v493, 1.442695
    %v507 = vpow.pop %v506
    %v508 = vmul.f32 %v494, 1.442695
    %v509 = vpow.pop %v508
    %v510 = vmul.f32 %v495, 1.442695
    %v511 = vpow.pop %v510
    %v512 = vsel %vm463, %v497, 0.0
    %513 = vadd.xlane.f32.xlu0 %v512
    %v514 = vpop.xlane.xlu0 %513
    %v515 = vsel %vm463, %v499, 0.0
    %516 = vadd.xlane.f32.xlu0 %v515
    %v517 = vpop.xlane.xlu0 %516
    %v518 = vsel %vm463, %v501, 0.0
    %519 = vadd.xlane.f32.xlu0 %v518
    %v520 = vpop.xlane.xlu0 %519
    %v521 = vsel %vm463, %v503, 0.0
    %522 = vadd.xlane.f32.xlu0 %v521
    %v523 = vpop.xlane.xlu0 %522
    %v524 = vsel %vm463, %v505, 0.0
    %525 = vadd.xlane.f32.xlu0 %v524
    %v526 = vpop.xlane.xlu0 %525
    %v527 = vsel %vm463, %v507, 0.0
    %528 = vadd.xlane.f32.xlu0 %v527
    %v529 = vpop.xlane.xlu0 %528
    %v530 = vsel %vm463, %v509, 0.0
    %531 = vadd.xlane.f32.xlu0 %v530
    %v532 = vpop.xlane.xlu0 %531
    %v533 = vsel %vm463, %v511, 0.0
    %534 = vadd.xlane.f32.xlu0 %v533
    %v535 = vpop.xlane.xlu0 %534
    %v536 = vrcp.pop %v514
    %v537 = vrcp.pop %v517
    %v538 = vrcp.pop %v520
    %v539 = vrcp.pop %v523
    %v540 = vrcp.pop %v526
    %v541 = vrcp.pop %v529
    %v542 = vrcp.pop %v532
    %v543 = vrcp.pop %v535
    %v544 = vmul.f32 %v497, %v536
    %v545 = vmul.f32 %v499, %v537
    %v546 = vmul.f32 %v501, %v538
    %v547 = vmul.f32 %v503, %v539
    %v548 = vmul.f32 %v505, %v540
    %v549 = vmul.f32 %v507, %v541
    %v550 = vmul.f32 %v509, %v542
    %v551 = vmul.f32 %v511, %v543
    %v553 = vsel %vm463, %v544, 0
    %v556 = vsel %vm463, %v545, 0
    %v559 = vsel %vm463, %v546, 0
    %v562 = vsel %vm463, %v547, 0
    %v565 = vsel %vm463, %v548, 0
    %v568 = vsel %vm463, %v549, 0
    %v571 = vsel %vm463, %v550, 0
    %v574 = vsel %vm463, %v551, 0
    %576 = vmatpush.msra.mxu0 0.0
    %577 = vmatpush.msra.mxu0 0.0
    %578 = vmatpush.msra.mxu0 0.0
    %579 = vmatpush.msra.mxu0 0.0
    %580 = vmatpush.msra.mxu0 0.0
    %581 = vmatpush.msra.mxu0 0.0
    %582 = vmatpush.msra.mxu0 0.0
    %583 = vmatpush.msra.mxu0 0.0
    %584 = vmatpush.msra.mxu0 %v371
    %585 = vmatpush.msra.mxu0 %v368
    %586 = vmatpush.msra.mxu0 %v343
    %587 = vmatpush.msra.mxu0 %v340
    %588 = vmatpush.msra.mxu0 %v315
    %589 = vmatpush.msra.mxu0 %v312
    %590 = vmatpush.msra.mxu0 %v287
    %591 = vmatpush.msra.mxu0 %v284
    %592 = vmatmul.f32.gmra.mxu0 %v553
    %v593 = vpop.f32.mrf.mxu0
    %v594 = vadd.f32 0.0, %v593
    %595 = vmatmul.f32.gmra.mxu0 %v556
    %v596 = vpop.f32.mrf.mxu0
    %v597 = vadd.f32 0.0, %v596
    %598 = vmatmul.f32.gmra.mxu0 %v559
    %v599 = vpop.f32.mrf.mxu0
    %v600 = vadd.f32 0.0, %v599
    %601 = vmatmul.f32.gmra.mxu0 %v562
    %v602 = vpop.f32.mrf.mxu0
    %v603 = vadd.f32 0.0, %v602
    %604 = vmatmul.f32.gmra.mxu0 %v565
    %v605 = vpop.f32.mrf.mxu0
    %v606 = vadd.f32 0.0, %v605
    %607 = vmatmul.f32.gmra.mxu0 %v568
    %v608 = vpop.f32.mrf.mxu0
    %v609 = vadd.f32 0.0, %v608
    %610 = vmatmul.f32.gmra.mxu0 %v571
    %v611 = vpop.f32.mrf.mxu0
    %v612 = vadd.f32 0.0, %v611
    %613 = vmatmul.f32.gmra.mxu0 %v574
    %v614 = vpop.f32.mrf.mxu0
    %v615 = vadd.f32 0.0, %v614
    %616 = vdwg.mxu0
    %v617 = vld [vmem:[%s4] sm:$0x7f]
    %s618 = scalar_lea.vmem %s2, 384
    %v619 = vld [vmem:[%s618] sm:$0xff]
    %v620 = vld [vmem:[%s618 + $0x8] sm:$0xff]
    %v621 = vld [vmem:[%s618 + $0x10] sm:$0xff]
    %v622 = vld [vmem:[%s618 + $0x18] sm:$0xff]
    %v624 = vsel %vm373, %v594, 0
    %v627 = vsel %vm373, %v597, 0
    %v630 = vsel %vm373, %v619, 0
    %v633 = vsel %vm373, %v620, 0
    %v636 = vsel %vm373, %v621, 0
    %v639 = vsel %vm373, %v622, 0
    %641 = vmatpush.xpose.msra.mxu0 0.0
    %642 = vmatpush.xpose.msra.mxu0 0.0
    %643 = vmatpush.xpose.msra.mxu0 0.0
    %644 = vmatpush.xpose.msra.mxu0 0.0
    %645 = vmatpush.xpose.msra.mxu0 0.0
    %646 = vmatpush.xpose.msra.mxu0 0.0
    %647 = vmatpush.xpose.msra.mxu0 0.0
    %648 = vmatpush.xpose.msra.mxu0 0.0
    %649 = vmatpush.xpose.msra.mxu0 0.0
    %650 = vmatpush.xpose.msra.mxu0 0.0
    %651 = vmatpush.xpose.msra.mxu0 0.0
    %652 = vmatpush.xpose.msra.mxu0 0.0
    %653 = vmatpush.xpose.msra.mxu0 %v639
    %654 = vmatpush.xpose.msra.mxu0 %v636
    %655 = vmatpush.xpose.msra.mxu0 %v633
    %656 = vmatpush.xpose.msra.mxu0 %v630
    %657 = vmatmul.f32.gmra.mxu0 %v624
    %v658 = vpop.f32.mrf.mxu0
    %v659 = vadd.f32 0.0, %v658
    %660 = vmatmul.f32.gmra.mxu0 %v627
    %v661 = vpop.f32.mrf.mxu0
    %v662 = vadd.f32 0.0, %v661
    %663 = vdwg.mxu0
    %v664 = vperm.slane %v617, 0
    %v665 = vadd.f32 %v664, %v659
    %v666 = vadd.f32 %v664, %v662
    %s667 = scalar_lea.vmem %s2, 416
    %v668 = vld [vmem:[%s667] sm:$0xff]
    %v669 = vld [vmem:[%s667 + $0x8] sm:$0xff]
    %v670 = vld [vmem:[%s667 + $0x10] sm:$0xff]
    %v671 = vld [vmem:[%s667 + $0x18] sm:$0xff]
    %v673 = vsel %vm373, %v600, 0
    %v676 = vsel %vm373, %v603, 0
    %v679 = vsel %vm373, %v668, 0
    %v682 = vsel %vm373, %v669, 0
    %v685 = vsel %vm373, %v670, 0
    %v688 = vsel %vm373, %v671, 0
    %690 = vmatpush.xpose.msra.mxu0 0.0
    %691 = vmatpush.xpose.msra.mxu0 0.0
    %692 = vmatpush.xpose.msra.mxu0 0.0
    %693 = vmatpush.xpose.msra.mxu0 0.0
    %694 = vmatpush.xpose.msra.mxu0 0.0
    %695 = vmatpush.xpose.msra.mxu0 0.0
    %696 = vmatpush.xpose.msra.mxu0 0.0
    %697 = vmatpush.xpose.msra.mxu0 0.0
    %698 = vmatpush.xpose.msra.mxu0 0.0
    %699 = vmatpush.xpose.msra.mxu0 0.0
    %700 = vmatpush.xpose.msra.mxu0 0.0
    %701 = vmatpush.xpose.msra.mxu0 0.0
    %702 = vmatpush.xpose.msra.mxu0 %v688
    %703 = vmatpush.xpose.msra.mxu0 %v685
    %704 = vmatpush.xpose.msra.mxu0 %v682
    %705 = vmatpush.xpose.msra.mxu0 %v679
    %706 = vmatmul.f32.gmra.mxu0 %v673
    %v707 = vpop.f32.mrf.mxu0
    %v708 = vadd.f32 0.0, %v707
    %709 = vmatmul.f32.gmra.mxu0 %v676
    %v710 = vpop.f32.mrf.mxu0
    %v711 = vadd.f32 0.0, %v710
    %712 = vdwg.mxu0
    %v713 = vadd.f32 %v665, %v708
    %v714 = vadd.f32 %v666, %v711
    %s715 = scalar_lea.vmem %s2, 448
    %v716 = vld [vmem:[%s715] sm:$0xff]
    %v717 = vld [vmem:[%s715 + $0x8] sm:$0xff]
    %v718 = vld [vmem:[%s715 + $0x10] sm:$0xff]
    %v719 = vld [vmem:[%s715 + $0x18] sm:$0xff]
    %v721 = vsel %vm373, %v606, 0
    %v724 = vsel %vm373, %v609, 0
    %v727 = vsel %vm373, %v716, 0
    %v730 = vsel %vm373, %v717, 0
    %v733 = vsel %vm373, %v718, 0
    %v736 = vsel %vm373, %v719, 0
    %738 = vmatpush.xpose.msra.mxu0 0.0
    %739 = vmatpush.xpose.msra.mxu0 0.0
    %740 = vmatpush.xpose.msra.mxu0 0.0
    %741 = vmatpush.xpose.msra.mxu0 0.0
    %742 = vmatpush.xpose.msra.mxu0 0.0
    %743 = vmatpush.xpose.msra.mxu0 0.0
    %744 = vmatpush.xpose.msra.mxu0 0.0
    %745 = vmatpush.xpose.msra.mxu0 0.0
    %746 = vmatpush.xpose.msra.mxu0 0.0
    %747 = vmatpush.xpose.msra.mxu0 0.0
    %748 = vmatpush.xpose.msra.mxu0 0.0
    %749 = vmatpush.xpose.msra.mxu0 0.0
    %750 = vmatpush.xpose.msra.mxu0 %v736
    %751 = vmatpush.xpose.msra.mxu0 %v733
    %752 = vmatpush.xpose.msra.mxu0 %v730
    %753 = vmatpush.xpose.msra.mxu0 %v727
    %754 = vmatmul.f32.gmra.mxu0 %v721
    %v755 = vpop.f32.mrf.mxu0
    %v756 = vadd.f32 0.0, %v755
    %757 = vmatmul.f32.gmra.mxu0 %v724
    %v758 = vpop.f32.mrf.mxu0
    %v759 = vadd.f32 0.0, %v758
    %760 = vdwg.mxu0
    %v761 = vadd.f32 %v713, %v756
    %v762 = vadd.f32 %v714, %v759
    %s763 = scalar_lea.vmem %s2, 480
    %v764 = vld [vmem:[%s763] sm:$0xff]
    %v765 = vld [vmem:[%s763 + $0x8] sm:$0xff]
    %v766 = vld [vmem:[%s763 + $0x10] sm:$0xff]
    %v767 = vld [vmem:[%s763 + $0x18] sm:$0xff]
    %v769 = vsel %vm373, %v612, 0
    %v772 = vsel %vm373, %v615, 0
    %v775 = vsel %vm373, %v764, 0
    %v778 = vsel %vm373, %v765, 0
    %v781 = vsel %vm373, %v766, 0
    %v784 = vsel %vm373, %v767, 0
    %786 = vmatpush.xpose.msra.mxu0 0.0
    %787 = vmatpush.xpose.msra.mxu0 0.0
    %788 = vmatpush.xpose.msra.mxu0 0.0
    %789 = vmatpush.xpose.msra.mxu0 0.0
    %790 = vmatpush.xpose.msra.mxu0 0.0
    %791 = vmatpush.xpose.msra.mxu0 0.0
    %792 = vmatpush.xpose.msra.mxu0 0.0
    %793 = vmatpush.xpose.msra.mxu0 0.0
    %794 = vmatpush.xpose.msra.mxu0 0.0
    %795 = vmatpush.xpose.msra.mxu0 0.0
    %796 = vmatpush.xpose.msra.mxu0 0.0
    %797 = vmatpush.xpose.msra.mxu0 0.0
    %798 = vmatpush.xpose.msra.mxu0 %v784
    %799 = vmatpush.xpose.msra.mxu0 %v781
    %800 = vmatpush.xpose.msra.mxu0 %v778
    %801 = vmatpush.xpose.msra.mxu0 %v775
    %802 = vmatmul.f32.gmra.mxu0 %v769
    %v803 = vpop.f32.mrf.mxu0
    %v804 = vadd.f32 0.0, %v803
    %805 = vmatmul.f32.gmra.mxu0 %v772
    %v806 = vpop.f32.mrf.mxu0
    %v807 = vadd.f32 0.0, %v806
    %808 = vdwg.mxu0
    %v809 = vadd.f32 %v761, %v804
    %v810 = vadd.f32 %v762, %v807
    %v811 = vadd.f32 %v809, %v21
    %v812 = vadd.f32 %v810, %v22
    %v813 = vsel %vm35, %v811, 0.0
    %814 = vadd.xlane.f32.xlu0 %v813
    %v815 = vpop.xlane.xlu0 %814
    %v816 = vsel %vm35, %v812, 0.0
    %817 = vadd.xlane.f32.xlu0 %v816
    %v818 = vpop.xlane.xlu0 %817
    %v819 = vrcp.pop 32.0
    %v820 = vmul.f32 32.0, %v819
    %v821 = vsub.f32 1.0, %v820
    %v822 = vmul.f32 %v819, %v821
    %v823 = vadd.f32 %v819, %v822
    %vm824 = vweird.f32 %v819
    %v825 = vsel %vm824, %v819, %v823
    %v826 = vmul.f32 %v815, %v825
    %v827 = vmul.f32 %v818, %v825
    %v828 = vsub.f32 %v811, %v826
    %v829 = vsub.f32 %v812, %v827
    %v830 = vmul.f32 %v828, %v828
    %v831 = vmul.f32 %v829, %v829
    %v832 = vsel %vm35, %v830, 0.0
    %833 = vadd.xlane.f32.xlu0 %v832
    %v834 = vpop.xlane.xlu0 %833
    %v835 = vsel %vm35, %v831, 0.0
    %836 = vadd.xlane.f32.xlu0 %v835
    %v837 = vpop.xlane.xlu0 %836
    %v838 = vmul.f32 %v834, %v825
    %v839 = vmul.f32 %v837, %v825
    %v840 = vadd.f32 %v838, 1e-05
    %v841 = vadd.f32 %v839, 1e-05
    %v842 = vrsqrt.pop %v840
    %v843 = vmul.f32 %v842, %v840
    %v844 = vmul.f32 %v843, %v842
    %v845 = vmul.f32 0.5, %v844
    %v846 = vsub.f32 1.5, %v845
    %v847 = vmul.f32 %v842, %v846
    %vm848 = vweird.f32 %v840
    %vm849 = vweird.f32 %v842
    %vm850 = vmor %vm848, %vm849
    %v851 = vsel %vm850, %v842, %v847
    %v852 = vrsqrt.pop %v841
    %v853 = vmul.f32 %v852, %v841
    %v854 = vmul.f32 %v853, %v852
    %v855 = vmul.f32 0.5, %v854
    %v856 = vsub.f32 1.5, %v855
    %v857 = vmul.f32 %v852, %v856
    %vm858 = vweird.f32 %v841
    %vm859 = vweird.f32 %v852
    %vm860 = vmor %vm858, %vm859
    %v861 = vsel %vm860, %v852, %v857
    %v862 = vmul.f32 %v828, %v851
    %v863 = vmul.f32 %v829, %v861
    %v864 = vperm.slane %v617, 1
    %v865 = vmul.f32 %v862, %v864
    %v866 = vmul.f32 %v863, %v864
    %v867 = vperm.slane %v617, 2
    %v868 = vadd.f32 %v865, %v867
    %v869 = vadd.f32 %v866, %v867
    %v870 = vld [vmem:[%s3] sm:$0xff]
    %v871 = vld [vmem:[%s3 + $0x8] sm:$0xff]
    %v872 = vld [vmem:[%s3 + $0x10] sm:$0xff]
    %v873 = vld [vmem:[%s3 + $0x18] sm:$0xff]
    %v874 = vperm.slane %v617, 3
    %v876 = vsel %vm35, %v868, 0
    %v879 = vsel %vm35, %v869, 0
    %881 = vmatpush.msra.mxu0 0.0
    %882 = vmatpush.msra.mxu0 0.0
    %883 = vmatpush.msra.mxu0 0.0
    %884 = vmatpush.msra.mxu0 0.0
    %885 = vmatpush.msra.mxu0 0.0
    %886 = vmatpush.msra.mxu0 0.0
    %887 = vmatpush.msra.mxu0 0.0
    %888 = vmatpush.msra.mxu0 0.0
    %889 = vmatpush.msra.mxu0 0.0
    %890 = vmatpush.msra.mxu0 0.0
    %891 = vmatpush.msra.mxu0 0.0
    %892 = vmatpush.msra.mxu0 0.0
    %893 = vmatpush.msra.mxu0 %v873
    %894 = vmatpush.msra.mxu0 %v872
    %895 = vmatpush.msra.mxu0 %v871
    %896 = vmatpush.msra.mxu0 %v870
    %897 = vmatmul.f32.gmra.mxu0 %v876
    %v898 = vpop.f32.mrf.mxu0
    %v899 = vadd.f32 %v874, %v898
    %900 = vmatmul.f32.gmra.mxu0 %v879
    %v901 = vpop.f32.mrf.mxu0
    %v902 = vadd.f32 %v874, %v901
    %903 = vdwg.mxu0
    %v904 = vmax.f32 %v899, 0.0
    %v905 = vmax.f32 %v902, 0.0
    %s906 = scalar_lea.vmem %s3, 32
    %v907 = vld [vmem:[%s906] sm:$0xff]
    %v908 = vld [vmem:[%s906 + $0x8] sm:$0xff]
    %v909 = vld [vmem:[%s906 + $0x10] sm:$0xff]
    %v910 = vld [vmem:[%s906 + $0x18] sm:$0xff]
    %v911 = vperm.slane %v617, 4
    %912 = vmatpush.xpose.msra.mxu0 0.0
    %913 = vmatpush.xpose.msra.mxu0 0.0
    %914 = vmatpush.xpose.msra.mxu0 0.0
    %915 = vmatpush.xpose.msra.mxu0 0.0
    %916 = vmatpush.xpose.msra.mxu0 0.0
    %917 = vmatpush.xpose.msra.mxu0 0.0
    %918 = vmatpush.xpose.msra.mxu0 0.0
    %919 = vmatpush.xpose.msra.mxu0 0.0
    %920 = vmatpush.xpose.msra.mxu0 0.0
    %921 = vmatpush.xpose.msra.mxu0 0.0
    %922 = vmatpush.xpose.msra.mxu0 0.0
    %923 = vmatpush.xpose.msra.mxu0 0.0
    %924 = vmatpush.xpose.msra.mxu0 %v910
    %925 = vmatpush.xpose.msra.mxu0 %v909
    %926 = vmatpush.xpose.msra.mxu0 %v908
    %927 = vmatpush.xpose.msra.mxu0 %v907
    %928 = vmatmul.f32.gmra.mxu0 %v904
    %v929 = vpop.f32.mrf.mxu0
    %v930 = vadd.f32 %v911, %v929
    %931 = vmatmul.f32.gmra.mxu0 %v905
    %v932 = vpop.f32.mrf.mxu0
    %v933 = vadd.f32 %v911, %v932
    %934 = vdwg.mxu0
    %v935 = vadd.f32 %v930, %v868
    %v936 = vadd.f32 %v933, %v869
    %v937 = vsel %vm35, %v935, 0.0
    %938 = vadd.xlane.f32.xlu0 %v937
    %v939 = vpop.xlane.xlu0 %938
    %v940 = vsel %vm35, %v936, 0.0
    %941 = vadd.xlane.f32.xlu0 %v940
    %v942 = vpop.xlane.xlu0 %941
    %v943 = vmul.f32 %v939, %v825
    %v944 = vmul.f32 %v942, %v825
    %v945 = vsub.f32 %v935, %v943
    %v946 = vsub.f32 %v936, %v944
    %v947 = vmul.f32 %v945, %v945
    %v948 = vmul.f32 %v946, %v946
    %v949 = vsel %vm35, %v947, 0.0
    %950 = vadd.xlane.f32.xlu0 %v949
    %v951 = vpop.xlane.xlu0 %950
    %v952 = vsel %vm35, %v948, 0.0
    %953 = vadd.xlane.f32.xlu0 %v952
    %v954 = vpop.xlane.xlu0 %953
    %v955 = vmul.f32 %v951, %v825
    %v956 = vmul.f32 %v954, %v825
    %v957 = vadd.f32 %v955, 1e-05
    %v958 = vadd.f32 %v956, 1e-05
    %v959 = vrsqrt.pop %v957
    %v960 = vmul.f32 %v959, %v957
    %v961 = vmul.f32 %v960, %v959
    %v962 = vmul.f32 0.5, %v961
    %v963 = vsub.f32 1.5, %v962
    %v964 = vmul.f32 %v959, %v963
    %vm965 = vweird.f32 %v957
    %vm966 = vweird.f32 %v959
    %vm967 = vmor %vm965, %vm966
    %v968 = vsel %vm967, %v959, %v964
    %v969 = vrsqrt.pop %v958
    %v970 = vmul.f32 %v969, %v958
    %v971 = vmul.f32 %v970, %v969
    %v972 = vmul.f32 0.5, %v971
    %v973 = vsub.f32 1.5, %v972
    %v974 = vmul.f32 %v969, %v973
    %vm975 = vweird.f32 %v958
    %vm976 = vweird.f32 %v969
    %vm977 = vmor %vm975, %vm976
    %v978 = vsel %vm977, %v969, %v974
    %v979 = vmul.f32 %v945, %v968
    %v980 = vmul.f32 %v946, %v978
    %v981 = vperm.slane %v617, 5
    %v982 = vmul.f32 %v979, %v981
    %v983 = vmul.f32 %v980, %v981
    %v984 = vperm.slane %v617, 6
    %v985 = vadd.f32 %v982, %v984
    %v986 = vadd.f32 %v983, %v984
    %s987 = scalar_lea.vmem %s2, 512
    %v988 = vld [vmem:[%s987] sm:$0xff]
    %v989 = vld [vmem:[%s987 + $0x8] sm:$0xff]
    %v990 = vld [vmem:[%s987 + $0x10] sm:$0xff]
    %v991 = vld [vmem:[%s987 + $0x18] sm:$0xff]
    %v993 = vsel %vm35, %v985, 0
    %v996 = vsel %vm35, %v986, 0
    %998 = vmatpush.msra.mxu0 0.0
    %999 = vmatpush.msra.mxu0 0.0
    %1000 = vmatpush.msra.mxu0 0.0
    %1001 = vmatpush.msra.mxu0 0.0
    %1002 = vmatpush.msra.mxu0 0.0
    %1003 = vmatpush.msra.mxu0 0.0
    %1004 = vmatpush.msra.mxu0 0.0
    %1005 = vmatpush.msra.mxu0 0.0
    %1006 = vmatpush.msra.mxu0 0.0
    %1007 = vmatpush.msra.mxu0 0.0
    %1008 = vmatpush.msra.mxu0 0.0
    %1009 = vmatpush.msra.mxu0 0.0
    %1010 = vmatpush.msra.mxu0 %v991
    %1011 = vmatpush.msra.mxu0 %v990
    %1012 = vmatpush.msra.mxu0 %v989
    %1013 = vmatpush.msra.mxu0 %v988
    %1014 = vmatmul.f32.gmra.mxu0 %v993
    %v1015 = vpop.f32.mrf.mxu0
    %v1016 = vadd.f32 0.0, %v1015
    %1017 = vmatmul.f32.gmra.mxu0 %v996
    %v1018 = vpop.f32.mrf.mxu0
    %v1019 = vadd.f32 0.0, %v1018
    %1020 = vdwg.mxu0
    %s1021 = scalar_lea.vmem %s2, 544
    %v1022 = vld [vmem:[%s1021] sm:$0xff]
    %v1023 = vld [vmem:[%s1021 + $0x8] sm:$0xff]
    %v1024 = vld [vmem:[%s1021 + $0x10] sm:$0xff]
    %v1025 = vld [vmem:[%s1021 + $0x18] sm:$0xff]
    %1026 = vmatpush.msra.mxu0 0.0
    %1027 = vmatpush.msra.mxu0 0.0
    %1028 = vmatpush.msra.mxu0 0.0
    %1029 = vmatpush.msra.mxu0 0.0
    %1030 = vmatpush.msra.mxu0 0.0
    %1031 = vmatpush.msra.mxu0 0.0
    %1032 = vmatpush.msra.mxu0 0.0
    %1033 = vmatpush.msra.mxu0 0.0
    %1034 = vmatpush.msra.mxu0 0.0
    %1035 = vmatpush.msra.mxu0 0.0
    %1036 = vmatpush.msra.mxu0 0.0
    %1037 = vmatpush.msra.mxu0 0.0
    %1038 = vmatpush.msra.mxu0 %v1025
    %1039 = vmatpush.msra.mxu0 %v1024
    %1040 = vmatpush.msra.mxu0 %v1023
    %1041 = vmatpush.msra.mxu0 %v1022
    %1042 = vmatmul.f32.gmra.mxu0 %v993
    %v1043 = vpop.f32.mrf.mxu0
    %v1044 = vadd.f32 0.0, %v1043
    %1045 = vmatmul.f32.gmra.mxu0 %v996
    %v1046 = vpop.f32.mrf.mxu0
    %v1047 = vadd.f32 0.0, %v1046
    %1048 = vdwg.mxu0
    %s1049 = scalar_lea.vmem %s2, 576
    %v1050 = vld [vmem:[%s1049] sm:$0xff]
    %v1051 = vld [vmem:[%s1049 + $0x8] sm:$0xff]
    %v1052 = vld [vmem:[%s1049 + $0x10] sm:$0xff]
    %v1053 = vld [vmem:[%s1049 + $0x18] sm:$0xff]
    %1054 = vmatpush.msra.mxu0 0.0
    %1055 = vmatpush.msra.mxu0 0.0
    %1056 = vmatpush.msra.mxu0 0.0
    %1057 = vmatpush.msra.mxu0 0.0
    %1058 = vmatpush.msra.mxu0 0.0
    %1059 = vmatpush.msra.mxu0 0.0
    %1060 = vmatpush.msra.mxu0 0.0
    %1061 = vmatpush.msra.mxu0 0.0
    %1062 = vmatpush.msra.mxu0 0.0
    %1063 = vmatpush.msra.mxu0 0.0
    %1064 = vmatpush.msra.mxu0 0.0
    %1065 = vmatpush.msra.mxu0 0.0
    %1066 = vmatpush.msra.mxu0 %v1053
    %1067 = vmatpush.msra.mxu0 %v1052
    %1068 = vmatpush.msra.mxu0 %v1051
    %1069 = vmatpush.msra.mxu0 %v1050
    %1070 = vmatmul.f32.gmra.mxu0 %v993
    %v1071 = vpop.f32.mrf.mxu0
    %v1072 = vadd.f32 0.0, %v1071
    %1073 = vmatmul.f32.gmra.mxu0 %v996
    %v1074 = vpop.f32.mrf.mxu0
    %v1075 = vadd.f32 0.0, %v1074
    %1076 = vdwg.mxu0
    %s1077 = scalar_lea.vmem %s2, 608
    %v1078 = vld [vmem:[%s1077] sm:$0xff]
    %v1079 = vld [vmem:[%s1077 + $0x8] sm:$0xff]
    %v1080 = vld [vmem:[%s1077 + $0x10] sm:$0xff]
    %v1081 = vld [vmem:[%s1077 + $0x18] sm:$0xff]
    %1082 = vmatpush.msra.mxu0 0.0
    %1083 = vmatpush.msra.mxu0 0.0
    %1084 = vmatpush.msra.mxu0 0.0
    %1085 = vmatpush.msra.mxu0 0.0
    %1086 = vmatpush.msra.mxu0 0.0
    %1087 = vmatpush.msra.mxu0 0.0
    %1088 = vmatpush.msra.mxu0 0.0
    %1089 = vmatpush.msra.mxu0 0.0
    %1090 = vmatpush.msra.mxu0 0.0
    %1091 = vmatpush.msra.mxu0 0.0
    %1092 = vmatpush.msra.mxu0 0.0
    %1093 = vmatpush.msra.mxu0 0.0
    %1094 = vmatpush.msra.mxu0 %v1081
    %1095 = vmatpush.msra.mxu0 %v1080
    %1096 = vmatpush.msra.mxu0 %v1079
    %1097 = vmatpush.msra.mxu0 %v1078
    %1098 = vmatmul.f32.gmra.mxu0 %v993
    %v1099 = vpop.f32.mrf.mxu0
    %v1100 = vadd.f32 0.0, %v1099
    %1101 = vmatmul.f32.gmra.mxu0 %v996
    %v1102 = vpop.f32.mrf.mxu0
    %v1103 = vadd.f32 0.0, %v1102
    %1104 = vdwg.mxu0
    %s1105 = scalar_lea.vmem %s2, 640
    %v1106 = vld [vmem:[%s1105] sm:$0xff]
    %v1107 = vld [vmem:[%s1105 + $0x8] sm:$0xff]
    %v1108 = vld [vmem:[%s1105 + $0x10] sm:$0xff]
    %v1109 = vld [vmem:[%s1105 + $0x18] sm:$0xff]
    %1110 = vmatpush.msra.mxu0 0.0
    %1111 = vmatpush.msra.mxu0 0.0
    %1112 = vmatpush.msra.mxu0 0.0
    %1113 = vmatpush.msra.mxu0 0.0
    %1114 = vmatpush.msra.mxu0 0.0
    %1115 = vmatpush.msra.mxu0 0.0
    %1116 = vmatpush.msra.mxu0 0.0
    %1117 = vmatpush.msra.mxu0 0.0
    %1118 = vmatpush.msra.mxu0 0.0
    %1119 = vmatpush.msra.mxu0 0.0
    %1120 = vmatpush.msra.mxu0 0.0
    %1121 = vmatpush.msra.mxu0 0.0
    %1122 = vmatpush.msra.mxu0 %v1109
    %1123 = vmatpush.msra.mxu0 %v1108
    %1124 = vmatpush.msra.mxu0 %v1107
    %1125 = vmatpush.msra.mxu0 %v1106
    %1126 = vmatmul.f32.gmra.mxu0 %v993
    %v1127 = vpop.f32.mrf.mxu0
    %v1128 = vadd.f32 0.0, %v1127
    %1129 = vmatmul.f32.gmra.mxu0 %v996
    %v1130 = vpop.f32.mrf.mxu0
    %v1131 = vadd.f32 0.0, %v1130
    %1132 = vdwg.mxu0
    %s1133 = scalar_lea.vmem %s2, 672
    %v1134 = vld [vmem:[%s1133] sm:$0xff]
    %v1135 = vld [vmem:[%s1133 + $0x8] sm:$0xff]
    %v1136 = vld [vmem:[%s1133 + $0x10] sm:$0xff]
    %v1137 = vld [vmem:[%s1133 + $0x18] sm:$0xff]
    %1138 = vmatpush.msra.mxu0 0.0
    %1139 = vmatpush.msra.mxu0 0.0
    %1140 = vmatpush.msra.mxu0 0.0
    %1141 = vmatpush.msra.mxu0 0.0
    %1142 = vmatpush.msra.mxu0 0.0
    %1143 = vmatpush.msra.mxu0 0.0
    %1144 = vmatpush.msra.mxu0 0.0
    %1145 = vmatpush.msra.mxu0 0.0
    %1146 = vmatpush.msra.mxu0 0.0
    %1147 = vmatpush.msra.mxu0 0.0
    %1148 = vmatpush.msra.mxu0 0.0
    %1149 = vmatpush.msra.mxu0 0.0
    %1150 = vmatpush.msra.mxu0 %v1137
    %1151 = vmatpush.msra.mxu0 %v1136
    %1152 = vmatpush.msra.mxu0 %v1135
    %1153 = vmatpush.msra.mxu0 %v1134
    %1154 = vmatmul.f32.gmra.mxu0 %v993
    %v1155 = vpop.f32.mrf.mxu0
    %v1156 = vadd.f32 0.0, %v1155
    %1157 = vmatmul.f32.gmra.mxu0 %v996
    %v1158 = vpop.f32.mrf.mxu0
    %v1159 = vadd.f32 0.0, %v1158
    %1160 = vdwg.mxu0
    %s1161 = scalar_lea.vmem %s2, 704
    %v1162 = vld [vmem:[%s1161] sm:$0xff]
    %v1163 = vld [vmem:[%s1161 + $0x8] sm:$0xff]
    %v1164 = vld [vmem:[%s1161 + $0x10] sm:$0xff]
    %v1165 = vld [vmem:[%s1161 + $0x18] sm:$0xff]
    %1166 = vmatpush.msra.mxu0 0.0
    %1167 = vmatpush.msra.mxu0 0.0
    %1168 = vmatpush.msra.mxu0 0.0
    %1169 = vmatpush.msra.mxu0 0.0
    %1170 = vmatpush.msra.mxu0 0.0
    %1171 = vmatpush.msra.mxu0 0.0
    %1172 = vmatpush.msra.mxu0 0.0
    %1173 = vmatpush.msra.mxu0 0.0
    %1174 = vmatpush.msra.mxu0 0.0
    %1175 = vmatpush.msra.mxu0 0.0
    %1176 = vmatpush.msra.mxu0 0.0
    %1177 = vmatpush.msra.mxu0 0.0
    %1178 = vmatpush.msra.mxu0 %v1165
    %1179 = vmatpush.msra.mxu0 %v1164
    %1180 = vmatpush.msra.mxu0 %v1163
    %1181 = vmatpush.msra.mxu0 %v1162
    %1182 = vmatmul.f32.gmra.mxu0 %v993
    %v1183 = vpop.f32.mrf.mxu0
    %v1184 = vadd.f32 0.0, %v1183
    %1185 = vmatmul.f32.gmra.mxu0 %v996
    %v1186 = vpop.f32.mrf.mxu0
    %v1187 = vadd.f32 0.0, %v1186
    %1188 = vdwg.mxu0
    %s1189 = scalar_lea.vmem %s2, 736
    %v1190 = vld [vmem:[%s1189] sm:$0xff]
    %v1191 = vld [vmem:[%s1189 + $0x8] sm:$0xff]
    %v1192 = vld [vmem:[%s1189 + $0x10] sm:$0xff]
    %v1193 = vld [vmem:[%s1189 + $0x18] sm:$0xff]
    %1194 = vmatpush.msra.mxu0 0.0
    %1195 = vmatpush.msra.mxu0 0.0
    %1196 = vmatpush.msra.mxu0 0.0
    %1197 = vmatpush.msra.mxu0 0.0
    %1198 = vmatpush.msra.mxu0 0.0
    %1199 = vmatpush.msra.mxu0 0.0
    %1200 = vmatpush.msra.mxu0 0.0
    %1201 = vmatpush.msra.mxu0 0.0
    %1202 = vmatpush.msra.mxu0 0.0
    %1203 = vmatpush.msra.mxu0 0.0
    %1204 = vmatpush.msra.mxu0 0.0
    %1205 = vmatpush.msra.mxu0 0.0
    %1206 = vmatpush.msra.mxu0 %v1193
    %1207 = vmatpush.msra.mxu0 %v1192
    %1208 = vmatpush.msra.mxu0 %v1191
    %1209 = vmatpush.msra.mxu0 %v1190
    %1210 = vmatmul.f32.gmra.mxu0 %v993
    %v1211 = vpop.f32.mrf.mxu0
    %v1212 = vadd.f32 0.0, %v1211
    %1213 = vmatmul.f32.gmra.mxu0 %v996
    %v1214 = vpop.f32.mrf.mxu0
    %v1215 = vadd.f32 0.0, %v1214
    %1216 = vdwg.mxu0
    %s1217 = scalar_lea.vmem %s2, 768
    %v1218 = vld [vmem:[%s1217] sm:$0xff]
    %v1219 = vld [vmem:[%s1217 + $0x8] sm:$0xff]
    %v1220 = vld [vmem:[%s1217 + $0x10] sm:$0xff]
    %v1221 = vld [vmem:[%s1217 + $0x18] sm:$0xff]
    %1222 = vmatpush.msra.mxu0 0.0
    %1223 = vmatpush.msra.mxu0 0.0
    %1224 = vmatpush.msra.mxu0 0.0
    %1225 = vmatpush.msra.mxu0 0.0
    %1226 = vmatpush.msra.mxu0 0.0
    %1227 = vmatpush.msra.mxu0 0.0
    %1228 = vmatpush.msra.mxu0 0.0
    %1229 = vmatpush.msra.mxu0 0.0
    %1230 = vmatpush.msra.mxu0 0.0
    %1231 = vmatpush.msra.mxu0 0.0
    %1232 = vmatpush.msra.mxu0 0.0
    %1233 = vmatpush.msra.mxu0 0.0
    %1234 = vmatpush.msra.mxu0 %v1221
    %1235 = vmatpush.msra.mxu0 %v1220
    %1236 = vmatpush.msra.mxu0 %v1219
    %1237 = vmatpush.msra.mxu0 %v1218
    %1238 = vmatmul.f32.gmra.mxu0 %v993
    %v1239 = vpop.f32.mrf.mxu0
    %v1240 = vadd.f32 0.0, %v1239
    %1241 = vmatmul.f32.gmra.mxu0 %v996
    %v1242 = vpop.f32.mrf.mxu0
    %v1243 = vadd.f32 0.0, %v1242
    %1244 = vdwg.mxu0
    %s1245 = scalar_lea.vmem %s2, 800
    %v1246 = vld [vmem:[%s1245] sm:$0xff]
    %v1247 = vld [vmem:[%s1245 + $0x8] sm:$0xff]
    %v1248 = vld [vmem:[%s1245 + $0x10] sm:$0xff]
    %v1249 = vld [vmem:[%s1245 + $0x18] sm:$0xff]
    %1250 = vmatpush.msra.mxu0 0.0
    %1251 = vmatpush.msra.mxu0 0.0
    %1252 = vmatpush.msra.mxu0 0.0
    %1253 = vmatpush.msra.mxu0 0.0
    %1254 = vmatpush.msra.mxu0 0.0
    %1255 = vmatpush.msra.mxu0 0.0
    %1256 = vmatpush.msra.mxu0 0.0
    %1257 = vmatpush.msra.mxu0 0.0
    %1258 = vmatpush.msra.mxu0 0.0
    %1259 = vmatpush.msra.mxu0 0.0
    %1260 = vmatpush.msra.mxu0 0.0
    %1261 = vmatpush.msra.mxu0 0.0
    %1262 = vmatpush.msra.mxu0 %v1249
    %1263 = vmatpush.msra.mxu0 %v1248
    %1264 = vmatpush.msra.mxu0 %v1247
    %1265 = vmatpush.msra.mxu0 %v1246
    %1266 = vmatmul.f32.gmra.mxu0 %v993
    %v1267 = vpop.f32.mrf.mxu0
    %v1268 = vadd.f32 0.0, %v1267
    %1269 = vmatmul.f32.gmra.mxu0 %v996
    %v1270 = vpop.f32.mrf.mxu0
    %v1271 = vadd.f32 0.0, %v1270
    %1272 = vdwg.mxu0
    %s1273 = scalar_lea.vmem %s2, 832
    %v1274 = vld [vmem:[%s1273] sm:$0xff]
    %v1275 = vld [vmem:[%s1273 + $0x8] sm:$0xff]
    %v1276 = vld [vmem:[%s1273 + $0x10] sm:$0xff]
    %v1277 = vld [vmem:[%s1273 + $0x18] sm:$0xff]
    %1278 = vmatpush.msra.mxu0 0.0
    %1279 = vmatpush.msra.mxu0 0.0
    %1280 = vmatpush.msra.mxu0 0.0
    %1281 = vmatpush.msra.mxu0 0.0
    %1282 = vmatpush.msra.mxu0 0.0
    %1283 = vmatpush.msra.mxu0 0.0
    %1284 = vmatpush.msra.mxu0 0.0
    %1285 = vmatpush.msra.mxu0 0.0
    %1286 = vmatpush.msra.mxu0 0.0
    %1287 = vmatpush.msra.mxu0 0.0
    %1288 = vmatpush.msra.mxu0 0.0
    %1289 = vmatpush.msra.mxu0 0.0
    %1290 = vmatpush.msra.mxu0 %v1277
    %1291 = vmatpush.msra.mxu0 %v1276
    %1292 = vmatpush.msra.mxu0 %v1275
    %1293 = vmatpush.msra.mxu0 %v1274
    %1294 = vmatmul.f32.gmra.mxu0 %v993
    %v1295 = vpop.f32.mrf.mxu0
    %v1296 = vadd.f32 0.0, %v1295
    %1297 = vmatmul.f32.gmra.mxu0 %v996
    %v1298 = vpop.f32.mrf.mxu0
    %v1299 = vadd.f32 0.0, %v1298
    %1300 = vdwg.mxu0
    %s1301 = scalar_lea.vmem %s2, 864
    %v1302 = vld [vmem:[%s1301] sm:$0xff]
    %v1303 = vld [vmem:[%s1301 + $0x8] sm:$0xff]
    %v1304 = vld [vmem:[%s1301 + $0x10] sm:$0xff]
    %v1305 = vld [vmem:[%s1301 + $0x18] sm:$0xff]
    %1306 = vmatpush.msra.mxu0 0.0
    %1307 = vmatpush.msra.mxu0 0.0
    %1308 = vmatpush.msra.mxu0 0.0
    %1309 = vmatpush.msra.mxu0 0.0
    %1310 = vmatpush.msra.mxu0 0.0
    %1311 = vmatpush.msra.mxu0 0.0
    %1312 = vmatpush.msra.mxu0 0.0
    %1313 = vmatpush.msra.mxu0 0.0
    %1314 = vmatpush.msra.mxu0 0.0
    %1315 = vmatpush.msra.mxu0 0.0
    %1316 = vmatpush.msra.mxu0 0.0
    %1317 = vmatpush.msra.mxu0 0.0
    %1318 = vmatpush.msra.mxu0 %v1305
    %1319 = vmatpush.msra.mxu0 %v1304
    %1320 = vmatpush.msra.mxu0 %v1303
    %1321 = vmatpush.msra.mxu0 %v1302
    %1322 = vmatmul.f32.gmra.mxu0 %v993
    %v1323 = vpop.f32.mrf.mxu0
    %v1324 = vadd.f32 0.0, %v1323
    %1325 = vmatmul.f32.gmra.mxu0 %v996
    %v1326 = vpop.f32.mrf.mxu0
    %v1327 = vadd.f32 0.0, %v1326
    %1328 = vdwg.mxu0
    %v1330 = vsel %vm373, %v1016, 0
    %v1333 = vsel %vm373, %v1019, 0
    %v1336 = vsel %vm373, %v1044, 0
    %v1339 = vsel %vm373, %v1047, 0
    %v1342 = vsel %vm373, %v1072, 0
    %v1345 = vsel %vm373, %v1075, 0
    %v1348 = vsel %vm373, %v1100, 0
    %v1351 = vsel %vm373, %v1103, 0
    %v1354 = vsel %vm373, %v1128, 0
    %v1357 = vsel %vm373, %v1131, 0
    %v1360 = vsel %vm373, %v1156, 0
    %v1363 = vsel %vm373, %v1159, 0
    %v1366 = vsel %vm373, %v1184, 0
    %v1369 = vsel %vm373, %v1187, 0
    %v1372 = vsel %vm373, %v1212, 0
    %v1375 = vsel %vm373, %v1215, 0
    %1377 = vmatpush.xpose.msra.mxu0 0.0
    %1378 = vmatpush.xpose.msra.mxu0 0.0
    %1379 = vmatpush.xpose.msra.mxu0 0.0
    %1380 = vmatpush.xpose.msra.mxu0 0.0
    %1381 = vmatpush.xpose.msra.mxu0 0.0
    %1382 = vmatpush.xpose.msra.mxu0 0.0
    %1383 = vmatpush.xpose.msra.mxu0 0.0
    %1384 = vmatpush.xpose.msra.mxu0 0.0
    %1385 = vmatpush.xpose.msra.mxu0 %v1375
    %1386 = vmatpush.xpose.msra.mxu0 %v1372
    %1387 = vmatpush.xpose.msra.mxu0 %v1369
    %1388 = vmatpush.xpose.msra.mxu0 %v1366
    %1389 = vmatpush.xpose.msra.mxu0 %v1363
    %1390 = vmatpush.xpose.msra.mxu0 %v1360
    %1391 = vmatpush.xpose.msra.mxu0 %v1357
    %1392 = vmatpush.xpose.msra.mxu0 %v1354
    %1393 = vmatmul.f32.gmra.mxu0 %v1330
    %v1394 = vpop.f32.mrf.mxu0
    %v1395 = vadd.f32 %v23, %v1394
    %1396 = vmatmul.f32.gmra.mxu0 %v1333
    %v1397 = vpop.f32.mrf.mxu0
    %v1398 = vadd.f32 %v24, %v1397
    %1399 = vmatmul.f32.gmra.mxu0 %v1336
    %v1400 = vpop.f32.mrf.mxu0
    %v1401 = vadd.f32 %v25, %v1400
    %1402 = vmatmul.f32.gmra.mxu0 %v1339
    %v1403 = vpop.f32.mrf.mxu0
    %v1404 = vadd.f32 %v26, %v1403
    %1405 = vmatmul.f32.gmra.mxu0 %v1342
    %v1406 = vpop.f32.mrf.mxu0
    %v1407 = vadd.f32 %v27, %v1406
    %1408 = vmatmul.f32.gmra.mxu0 %v1345
    %v1409 = vpop.f32.mrf.mxu0
    %v1410 = vadd.f32 %v28, %v1409
    %1411 = vmatmul.f32.gmra.mxu0 %v1348
    %v1412 = vpop.f32.mrf.mxu0
    %v1413 = vadd.f32 %v29, %v1412
    %1414 = vmatmul.f32.gmra.mxu0 %v1351
    %v1415 = vpop.f32.mrf.mxu0
    %v1416 = vadd.f32 %v30, %v1415
    %1417 = vdwg.mxu0
    %v1418 = vsel %vm463, %v1395, -inf
    %1419 = vmax.xlane.f32.xlu0 %v1418
    %v1420 = vpop.xlane.xlu0 %1419
    %v1421 = vsel %vm463, %v1398, -inf
    %1422 = vmax.xlane.f32.xlu0 %v1421
    %v1423 = vpop.xlane.xlu0 %1422
    %v1424 = vsel %vm463, %v1401, -inf
    %1425 = vmax.xlane.f32.xlu0 %v1424
    %v1426 = vpop.xlane.xlu0 %1425
    %v1427 = vsel %vm463, %v1404, -inf
    %1428 = vmax.xlane.f32.xlu0 %v1427
    %v1429 = vpop.xlane.xlu0 %1428
    %v1430 = vsel %vm463, %v1407, -inf
    %1431 = vmax.xlane.f32.xlu0 %v1430
    %v1432 = vpop.xlane.xlu0 %1431
    %v1433 = vsel %vm463, %v1410, -inf
    %1434 = vmax.xlane.f32.xlu0 %v1433
    %v1435 = vpop.xlane.xlu0 %1434
    %v1436 = vsel %vm463, %v1413, -inf
    %1437 = vmax.xlane.f32.xlu0 %v1436
    %v1438 = vpop.xlane.xlu0 %1437
    %v1439 = vsel %vm463, %v1416, -inf
    %1440 = vmax.xlane.f32.xlu0 %v1439
    %v1441 = vpop.xlane.xlu0 %1440
    %v1442 = vsub.f32 %v1395, %v1420
    %v1443 = vsub.f32 %v1398, %v1423
    %v1444 = vsub.f32 %v1401, %v1426
    %v1445 = vsub.f32 %v1404, %v1429
    %v1446 = vsub.f32 %v1407, %v1432
    %v1447 = vsub.f32 %v1410, %v1435
    %v1448 = vsub.f32 %v1413, %v1438
    %v1449 = vsub.f32 %v1416, %v1441
    %v1450 = vmul.f32 %v1442, 1.442695
    %v1451 = vpow.pop %v1450
    %v1452 = vmul.f32 %v1443, 1.442695
    %v1453 = vpow.pop %v1452
    %v1454 = vmul.f32 %v1444, 1.442695
    %v1455 = vpow.pop %v1454
    %v1456 = vmul.f32 %v1445, 1.442695
    %v1457 = vpow.pop %v1456
    %v1458 = vmul.f32 %v1446, 1.442695
    %v1459 = vpow.pop %v1458
    %v1460 = vmul.f32 %v1447, 1.442695
    %v1461 = vpow.pop %v1460
    %v1462 = vmul.f32 %v1448, 1.442695
    %v1463 = vpow.pop %v1462
    %v1464 = vmul.f32 %v1449, 1.442695
    %v1465 = vpow.pop %v1464
    %v1466 = vsel %vm463, %v1451, 0.0
    %1467 = vadd.xlane.f32.xlu0 %v1466
    %v1468 = vpop.xlane.xlu0 %1467
    %v1469 = vsel %vm463, %v1453, 0.0
    %1470 = vadd.xlane.f32.xlu0 %v1469
    %v1471 = vpop.xlane.xlu0 %1470
    %v1472 = vsel %vm463, %v1455, 0.0
    %1473 = vadd.xlane.f32.xlu0 %v1472
    %v1474 = vpop.xlane.xlu0 %1473
    %v1475 = vsel %vm463, %v1457, 0.0
    %1476 = vadd.xlane.f32.xlu0 %v1475
    %v1477 = vpop.xlane.xlu0 %1476
    %v1478 = vsel %vm463, %v1459, 0.0
    %1479 = vadd.xlane.f32.xlu0 %v1478
    %v1480 = vpop.xlane.xlu0 %1479
    %v1481 = vsel %vm463, %v1461, 0.0
    %1482 = vadd.xlane.f32.xlu0 %v1481
    %v1483 = vpop.xlane.xlu0 %1482
    %v1484 = vsel %vm463, %v1463, 0.0
    %1485 = vadd.xlane.f32.xlu0 %v1484
    %v1486 = vpop.xlane.xlu0 %1485
    %v1487 = vsel %vm463, %v1465, 0.0
    %1488 = vadd.xlane.f32.xlu0 %v1487
    %v1489 = vpop.xlane.xlu0 %1488
    %v1490 = vrcp.pop %v1468
    %v1491 = vrcp.pop %v1471
    %v1492 = vrcp.pop %v1474
    %v1493 = vrcp.pop %v1477
    %v1494 = vrcp.pop %v1480
    %v1495 = vrcp.pop %v1483
    %v1496 = vrcp.pop %v1486
    %v1497 = vrcp.pop %v1489
    %v1498 = vmul.f32 %v1451, %v1490
    %v1499 = vmul.f32 %v1453, %v1491
    %v1500 = vmul.f32 %v1455, %v1492
    %v1501 = vmul.f32 %v1457, %v1493
    %v1502 = vmul.f32 %v1459, %v1494
    %v1503 = vmul.f32 %v1461, %v1495
    %v1504 = vmul.f32 %v1463, %v1496
    %v1505 = vmul.f32 %v1465, %v1497
    %v1507 = vsel %vm463, %v1498, 0
    %v1510 = vsel %vm463, %v1499, 0
    %v1513 = vsel %vm463, %v1500, 0
    %v1516 = vsel %vm463, %v1501, 0
    %v1519 = vsel %vm463, %v1502, 0
    %v1522 = vsel %vm463, %v1503, 0
    %v1525 = vsel %vm463, %v1504, 0
    %v1528 = vsel %vm463, %v1505, 0
    %1530 = vmatpush.msra.mxu0 0.0
    %1531 = vmatpush.msra.mxu0 0.0
    %1532 = vmatpush.msra.mxu0 0.0
    %1533 = vmatpush.msra.mxu0 0.0
    %1534 = vmatpush.msra.mxu0 0.0
    %1535 = vmatpush.msra.mxu0 0.0
    %1536 = vmatpush.msra.mxu0 0.0
    %1537 = vmatpush.msra.mxu0 0.0
    %1538 = vmatpush.msra.mxu0 %v1327
    %1539 = vmatpush.msra.mxu0 %v1324
    %1540 = vmatpush.msra.mxu0 %v1299
    %1541 = vmatpush.msra.mxu0 %v1296
    %1542 = vmatpush.msra.mxu0 %v1271
    %1543 = vmatpush.msra.mxu0 %v1268
    %1544 = vmatpush.msra.mxu0 %v1243
    %1545 = vmatpush.msra.mxu0 %v1240
    %1546 = vmatmul.f32.gmra.mxu0 %v1507
    %v1547 = vpop.f32.mrf.mxu0
    %v1548 = vadd.f32 0.0, %v1547
    %1549 = vmatmul.f32.gmra.mxu0 %v1510
    %v1550 = vpop.f32.mrf.mxu0
    %v1551 = vadd.f32 0.0, %v1550
    %1552 = vmatmul.f32.gmra.mxu0 %v1513
    %v1553 = vpop.f32.mrf.mxu0
    %v1554 = vadd.f32 0.0, %v1553
    %1555 = vmatmul.f32.gmra.mxu0 %v1516
    %v1556 = vpop.f32.mrf.mxu0
    %v1557 = vadd.f32 0.0, %v1556
    %1558 = vmatmul.f32.gmra.mxu0 %v1519
    %v1559 = vpop.f32.mrf.mxu0
    %v1560 = vadd.f32 0.0, %v1559
    %1561 = vmatmul.f32.gmra.mxu0 %v1522
    %v1562 = vpop.f32.mrf.mxu0
    %v1563 = vadd.f32 0.0, %v1562
    %1564 = vmatmul.f32.gmra.mxu0 %v1525
    %v1565 = vpop.f32.mrf.mxu0
    %v1566 = vadd.f32 0.0, %v1565
    %1567 = vmatmul.f32.gmra.mxu0 %v1528
    %v1568 = vpop.f32.mrf.mxu0
    %v1569 = vadd.f32 0.0, %v1568
    %1570 = vdwg.mxu0
    %s1571 = scalar_lea.vmem %s4, 8
    %v1572 = vld [vmem:[%s1571] sm:$0x7f]
    %s1573 = scalar_lea.vmem %s2, 896
    %v1574 = vld [vmem:[%s1573] sm:$0xff]
    %v1575 = vld [vmem:[%s1573 + $0x8] sm:$0xff]
    %v1576 = vld [vmem:[%s1573 + $0x10] sm:$0xff]
    %v1577 = vld [vmem:[%s1573 + $0x18] sm:$0xff]
    %v1579 = vsel %vm373, %v1548, 0
    %v1582 = vsel %vm373, %v1551, 0
    %v1585 = vsel %vm373, %v1574, 0
    %v1588 = vsel %vm373, %v1575, 0
    %v1591 = vsel %vm373, %v1576, 0
    %v1594 = vsel %vm373, %v1577, 0
    %1596 = vmatpush.xpose.msra.mxu0 0.0
    %1597 = vmatpush.xpose.msra.mxu0 0.0
    %1598 = vmatpush.xpose.msra.mxu0 0.0
    %1599 = vmatpush.xpose.msra.mxu0 0.0
    %1600 = vmatpush.xpose.msra.mxu0 0.0
    %1601 = vmatpush.xpose.msra.mxu0 0.0
    %1602 = vmatpush.xpose.msra.mxu0 0.0
    %1603 = vmatpush.xpose.msra.mxu0 0.0
    %1604 = vmatpush.xpose.msra.mxu0 0.0
    %1605 = vmatpush.xpose.msra.mxu0 0.0
    %1606 = vmatpush.xpose.msra.mxu0 0.0
    %1607 = vmatpush.xpose.msra.mxu0 0.0
    %1608 = vmatpush.xpose.msra.mxu0 %v1594
    %1609 = vmatpush.xpose.msra.mxu0 %v1591
    %1610 = vmatpush.xpose.msra.mxu0 %v1588
    %1611 = vmatpush.xpose.msra.mxu0 %v1585
    %1612 = vmatmul.f32.gmra.mxu0 %v1579
    %v1613 = vpop.f32.mrf.mxu0
    %v1614 = vadd.f32 0.0, %v1613
    %1615 = vmatmul.f32.gmra.mxu0 %v1582
    %v1616 = vpop.f32.mrf.mxu0
    %v1617 = vadd.f32 0.0, %v1616
    %1618 = vdwg.mxu0
    %v1619 = vperm.slane %v1572, 0
    %v1620 = vadd.f32 %v1619, %v1614
    %v1621 = vadd.f32 %v1619, %v1617
    %s1622 = scalar_lea.vmem %s2, 928
    %v1623 = vld [vmem:[%s1622] sm:$0xff]
    %v1624 = vld [vmem:[%s1622 + $0x8] sm:$0xff]
    %v1625 = vld [vmem:[%s1622 + $0x10] sm:$0xff]
    %v1626 = vld [vmem:[%s1622 + $0x18] sm:$0xff]
    %v1628 = vsel %vm373, %v1554, 0
    %v1631 = vsel %vm373, %v1557, 0
    %v1634 = vsel %vm373, %v1623, 0
    %v1637 = vsel %vm373, %v1624, 0
    %v1640 = vsel %vm373, %v1625, 0
    %v1643 = vsel %vm373, %v1626, 0
    %1645 = vmatpush.xpose.msra.mxu0 0.0
    %1646 = vmatpush.xpose.msra.mxu0 0.0
    %1647 = vmatpush.xpose.msra.mxu0 0.0
    %1648 = vmatpush.xpose.msra.mxu0 0.0
    %1649 = vmatpush.xpose.msra.mxu0 0.0
    %1650 = vmatpush.xpose.msra.mxu0 0.0
    %1651 = vmatpush.xpose.msra.mxu0 0.0
    %1652 = vmatpush.xpose.msra.mxu0 0.0
    %1653 = vmatpush.xpose.msra.mxu0 0.0
    %1654 = vmatpush.xpose.msra.mxu0 0.0
    %1655 = vmatpush.xpose.msra.mxu0 0.0
    %1656 = vmatpush.xpose.msra.mxu0 0.0
    %1657 = vmatpush.xpose.msra.mxu0 %v1643
    %1658 = vmatpush.xpose.msra.mxu0 %v1640
    %1659 = vmatpush.xpose.msra.mxu0 %v1637
    %1660 = vmatpush.xpose.msra.mxu0 %v1634
    %1661 = vmatmul.f32.gmra.mxu0 %v1628
    %v1662 = vpop.f32.mrf.mxu0
    %v1663 = vadd.f32 0.0, %v1662
    %1664 = vmatmul.f32.gmra.mxu0 %v1631
    %v1665 = vpop.f32.mrf.mxu0
    %v1666 = vadd.f32 0.0, %v1665
    %1667 = vdwg.mxu0
    %v1668 = vadd.f32 %v1620, %v1663
    %v1669 = vadd.f32 %v1621, %v1666
    %s1670 = scalar_lea.vmem %s2, 960
    %v1671 = vld [vmem:[%s1670] sm:$0xff]
    %v1672 = vld [vmem:[%s1670 + $0x8] sm:$0xff]
    %v1673 = vld [vmem:[%s1670 + $0x10] sm:$0xff]
    %v1674 = vld [vmem:[%s1670 + $0x18] sm:$0xff]
    %v1676 = vsel %vm373, %v1560, 0
    %v1679 = vsel %vm373, %v1563, 0
    %v1682 = vsel %vm373, %v1671, 0
    %v1685 = vsel %vm373, %v1672, 0
    %v1688 = vsel %vm373, %v1673, 0
    %v1691 = vsel %vm373, %v1674, 0
    %1693 = vmatpush.xpose.msra.mxu0 0.0
    %1694 = vmatpush.xpose.msra.mxu0 0.0
    %1695 = vmatpush.xpose.msra.mxu0 0.0
    %1696 = vmatpush.xpose.msra.mxu0 0.0
    %1697 = vmatpush.xpose.msra.mxu0 0.0
    %1698 = vmatpush.xpose.msra.mxu0 0.0
    %1699 = vmatpush.xpose.msra.mxu0 0.0
    %1700 = vmatpush.xpose.msra.mxu0 0.0
    %1701 = vmatpush.xpose.msra.mxu0 0.0
    %1702 = vmatpush.xpose.msra.mxu0 0.0
    %1703 = vmatpush.xpose.msra.mxu0 0.0
    %1704 = vmatpush.xpose.msra.mxu0 0.0
    %1705 = vmatpush.xpose.msra.mxu0 %v1691
    %1706 = vmatpush.xpose.msra.mxu0 %v1688
    %1707 = vmatpush.xpose.msra.mxu0 %v1685
    %1708 = vmatpush.xpose.msra.mxu0 %v1682
    %1709 = vmatmul.f32.gmra.mxu0 %v1676
    %v1710 = vpop.f32.mrf.mxu0
    %v1711 = vadd.f32 0.0, %v1710
    %1712 = vmatmul.f32.gmra.mxu0 %v1679
    %v1713 = vpop.f32.mrf.mxu0
    %v1714 = vadd.f32 0.0, %v1713
    %1715 = vdwg.mxu0
    %v1716 = vadd.f32 %v1668, %v1711
    %v1717 = vadd.f32 %v1669, %v1714
    %s1718 = scalar_lea.vmem %s2, 992
    %v1719 = vld [vmem:[%s1718] sm:$0xff]
    %v1720 = vld [vmem:[%s1718 + $0x8] sm:$0xff]
    %v1721 = vld [vmem:[%s1718 + $0x10] sm:$0xff]
    %v1722 = vld [vmem:[%s1718 + $0x18] sm:$0xff]
    %v1724 = vsel %vm373, %v1566, 0
    %v1727 = vsel %vm373, %v1569, 0
    %v1730 = vsel %vm373, %v1719, 0
    %v1733 = vsel %vm373, %v1720, 0
    %v1736 = vsel %vm373, %v1721, 0
    %v1739 = vsel %vm373, %v1722, 0
    %1741 = vmatpush.xpose.msra.mxu0 0.0
    %1742 = vmatpush.xpose.msra.mxu0 0.0
    %1743 = vmatpush.xpose.msra.mxu0 0.0
    %1744 = vmatpush.xpose.msra.mxu0 0.0
    %1745 = vmatpush.xpose.msra.mxu0 0.0
    %1746 = vmatpush.xpose.msra.mxu0 0.0
    %1747 = vmatpush.xpose.msra.mxu0 0.0
    %1748 = vmatpush.xpose.msra.mxu0 0.0
    %1749 = vmatpush.xpose.msra.mxu0 0.0
    %1750 = vmatpush.xpose.msra.mxu0 0.0
    %1751 = vmatpush.xpose.msra.mxu0 0.0
    %1752 = vmatpush.xpose.msra.mxu0 0.0
    %1753 = vmatpush.xpose.msra.mxu0 %v1739
    %1754 = vmatpush.xpose.msra.mxu0 %v1736
    %1755 = vmatpush.xpose.msra.mxu0 %v1733
    %1756 = vmatpush.xpose.msra.mxu0 %v1730
    %1757 = vmatmul.f32.gmra.mxu0 %v1724
    %v1758 = vpop.f32.mrf.mxu0
    %v1759 = vadd.f32 0.0, %v1758
    %1760 = vmatmul.f32.gmra.mxu0 %v1727
    %v1761 = vpop.f32.mrf.mxu0
    %v1762 = vadd.f32 0.0, %v1761
    %1763 = vdwg.mxu0
    %v1764 = vadd.f32 %v1716, %v1759
    %v1765 = vadd.f32 %v1717, %v1762
    %v1766 = vadd.f32 %v1764, %v985
    %v1767 = vadd.f32 %v1765, %v986
    %v1768 = vsel %vm35, %v1766, 0.0
    %1769 = vadd.xlane.f32.xlu0 %v1768
    %v1770 = vpop.xlane.xlu0 %1769
    %v1771 = vsel %vm35, %v1767, 0.0
    %1772 = vadd.xlane.f32.xlu0 %v1771
    %v1773 = vpop.xlane.xlu0 %1772
    %v1774 = vmul.f32 %v1770, %v825
    %v1775 = vmul.f32 %v1773, %v825
    %v1776 = vsub.f32 %v1766, %v1774
    %v1777 = vsub.f32 %v1767, %v1775
    %v1778 = vmul.f32 %v1776, %v1776
    %v1779 = vmul.f32 %v1777, %v1777
    %v1780 = vsel %vm35, %v1778, 0.0
    %1781 = vadd.xlane.f32.xlu0 %v1780
    %v1782 = vpop.xlane.xlu0 %1781
    %v1783 = vsel %vm35, %v1779, 0.0
    %1784 = vadd.xlane.f32.xlu0 %v1783
    %v1785 = vpop.xlane.xlu0 %1784
    %v1786 = vmul.f32 %v1782, %v825
    %v1787 = vmul.f32 %v1785, %v825
    %v1788 = vadd.f32 %v1786, 1e-05
    %v1789 = vadd.f32 %v1787, 1e-05
    %v1790 = vrsqrt.pop %v1788
    %v1791 = vmul.f32 %v1790, %v1788
    %v1792 = vmul.f32 %v1791, %v1790
    %v1793 = vmul.f32 0.5, %v1792
    %v1794 = vsub.f32 1.5, %v1793
    %v1795 = vmul.f32 %v1790, %v1794
    %vm1796 = vweird.f32 %v1788
    %vm1797 = vweird.f32 %v1790
    %vm1798 = vmor %vm1796, %vm1797
    %v1799 = vsel %vm1798, %v1790, %v1795
    %v1800 = vrsqrt.pop %v1789
    %v1801 = vmul.f32 %v1800, %v1789
    %v1802 = vmul.f32 %v1801, %v1800
    %v1803 = vmul.f32 0.5, %v1802
    %v1804 = vsub.f32 1.5, %v1803
    %v1805 = vmul.f32 %v1800, %v1804
    %vm1806 = vweird.f32 %v1789
    %vm1807 = vweird.f32 %v1800
    %vm1808 = vmor %vm1806, %vm1807
    %v1809 = vsel %vm1808, %v1800, %v1805
    %v1810 = vmul.f32 %v1776, %v1799
    %v1811 = vmul.f32 %v1777, %v1809
    %v1812 = vperm.slane %v1572, 1
    %v1813 = vmul.f32 %v1810, %v1812
    %v1814 = vmul.f32 %v1811, %v1812
    %v1815 = vperm.slane %v1572, 2
    %v1816 = vadd.f32 %v1813, %v1815
    %v1817 = vadd.f32 %v1814, %v1815
    %s1818 = scalar_lea.vmem %s3, 64
    %v1819 = vld [vmem:[%s1818] sm:$0xff]
    %v1820 = vld [vmem:[%s1818 + $0x8] sm:$0xff]
    %v1821 = vld [vmem:[%s1818 + $0x10] sm:$0xff]
    %v1822 = vld [vmem:[%s1818 + $0x18] sm:$0xff]
    %v1823 = vperm.slane %v1572, 3
    %v1825 = vsel %vm35, %v1816, 0
    %v1828 = vsel %vm35, %v1817, 0
    %1830 = vmatpush.msra.mxu0 0.0
    %1831 = vmatpush.msra.mxu0 0.0
    %1832 = vmatpush.msra.mxu0 0.0
    %1833 = vmatpush.msra.mxu0 0.0
    %1834 = vmatpush.msra.mxu0 0.0
    %1835 = vmatpush.msra.mxu0 0.0
    %1836 = vmatpush.msra.mxu0 0.0
    %1837 = vmatpush.msra.mxu0 0.0
    %1838 = vmatpush.msra.mxu0 0.0
    %1839 = vmatpush.msra.mxu0 0.0
    %1840 = vmatpush.msra.mxu0 0.0
    %1841 = vmatpush.msra.mxu0 0.0
    %1842 = vmatpush.msra.mxu0 %v1822
    %1843 = vmatpush.msra.mxu0 %v1821
    %1844 = vmatpush.msra.mxu0 %v1820
    %1845 = vmatpush.msra.mxu0 %v1819
    %1846 = vmatmul.f32.gmra.mxu0 %v1825
    %v1847 = vpop.f32.mrf.mxu0
    %v1848 = vadd.f32 %v1823, %v1847
    %1849 = vmatmul.f32.gmra.mxu0 %v1828
    %v1850 = vpop.f32.mrf.mxu0
    %v1851 = vadd.f32 %v1823, %v1850
    %1852 = vdwg.mxu0
    %v1853 = vmax.f32 %v1848, 0.0
    %v1854 = vmax.f32 %v1851, 0.0
    %s1855 = scalar_lea.vmem %s3, 96
    %v1856 = vld [vmem:[%s1855] sm:$0xff]
    %v1857 = vld [vmem:[%s1855 + $0x8] sm:$0xff]
    %v1858 = vld [vmem:[%s1855 + $0x10] sm:$0xff]
    %v1859 = vld [vmem:[%s1855 + $0x18] sm:$0xff]
    %v1860 = vperm.slane %v1572, 4
    %1861 = vmatpush.xpose.msra.mxu0 0.0
    %1862 = vmatpush.xpose.msra.mxu0 0.0
    %1863 = vmatpush.xpose.msra.mxu0 0.0
    %1864 = vmatpush.xpose.msra.mxu0 0.0
    %1865 = vmatpush.xpose.msra.mxu0 0.0
    %1866 = vmatpush.xpose.msra.mxu0 0.0
    %1867 = vmatpush.xpose.msra.mxu0 0.0
    %1868 = vmatpush.xpose.msra.mxu0 0.0
    %1869 = vmatpush.xpose.msra.mxu0 0.0
    %1870 = vmatpush.xpose.msra.mxu0 0.0
    %1871 = vmatpush.xpose.msra.mxu0 0.0
    %1872 = vmatpush.xpose.msra.mxu0 0.0
    %1873 = vmatpush.xpose.msra.mxu0 %v1859
    %1874 = vmatpush.xpose.msra.mxu0 %v1858
    %1875 = vmatpush.xpose.msra.mxu0 %v1857
    %1876 = vmatpush.xpose.msra.mxu0 %v1856
    %1877 = vmatmul.f32.gmra.mxu0 %v1853
    %v1878 = vpop.f32.mrf.mxu0
    %v1879 = vadd.f32 %v1860, %v1878
    %1880 = vmatmul.f32.gmra.mxu0 %v1854
    %v1881 = vpop.f32.mrf.mxu0
    %v1882 = vadd.f32 %v1860, %v1881
    %1883 = vdwg.mxu0
    %v1884 = vadd.f32 %v1879, %v1816
    %v1885 = vadd.f32 %v1882, %v1817
    %v1886 = vsel %vm35, %v1884, 0.0
    %1887 = vadd.xlane.f32.xlu0 %v1886
    %v1888 = vpop.xlane.xlu0 %1887
    %v1889 = vsel %vm35, %v1885, 0.0
    %1890 = vadd.xlane.f32.xlu0 %v1889
    %v1891 = vpop.xlane.xlu0 %1890
    %v1892 = vmul.f32 %v1888, %v825
    %v1893 = vmul.f32 %v1891, %v825
    %v1894 = vsub.f32 %v1884, %v1892
    %v1895 = vsub.f32 %v1885, %v1893
    %v1896 = vmul.f32 %v1894, %v1894
    %v1897 = vmul.f32 %v1895, %v1895
    %v1898 = vsel %vm35, %v1896, 0.0
    %1899 = vadd.xlane.f32.xlu0 %v1898
    %v1900 = vpop.xlane.xlu0 %1899
    %v1901 = vsel %vm35, %v1897, 0.0
    %1902 = vadd.xlane.f32.xlu0 %v1901
    %v1903 = vpop.xlane.xlu0 %1902
    %v1904 = vmul.f32 %v1900, %v825
    %v1905 = vmul.f32 %v1903, %v825
    %v1906 = vadd.f32 %v1904, 1e-05
    %v1907 = vadd.f32 %v1905, 1e-05
    %v1908 = vrsqrt.pop %v1906
    %v1909 = vmul.f32 %v1908, %v1906
    %v1910 = vmul.f32 %v1909, %v1908
    %v1911 = vmul.f32 0.5, %v1910
    %v1912 = vsub.f32 1.5, %v1911
    %v1913 = vmul.f32 %v1908, %v1912
    %vm1914 = vweird.f32 %v1906
    %vm1915 = vweird.f32 %v1908
    %vm1916 = vmor %vm1914, %vm1915
    %v1917 = vsel %vm1916, %v1908, %v1913
    %v1918 = vrsqrt.pop %v1907
    %v1919 = vmul.f32 %v1918, %v1907
    %v1920 = vmul.f32 %v1919, %v1918
    %v1921 = vmul.f32 0.5, %v1920
    %v1922 = vsub.f32 1.5, %v1921
    %v1923 = vmul.f32 %v1918, %v1922
    %vm1924 = vweird.f32 %v1907
    %vm1925 = vweird.f32 %v1918
    %vm1926 = vmor %vm1924, %vm1925
    %v1927 = vsel %vm1926, %v1918, %v1923
    %v1928 = vmul.f32 %v1894, %v1917
    %v1929 = vmul.f32 %v1895, %v1927
    %v1930 = vperm.slane %v1572, 5
    %v1931 = vmul.f32 %v1928, %v1930
    %v1932 = vmul.f32 %v1929, %v1930
    %v1933 = vperm.slane %v1572, 6
    %v1934 = vadd.f32 %v1931, %v1933
    %v1935 = vadd.f32 %v1932, %v1933
    %1936 = vst.msk [vmem:[#allocation2] sm:$0xff] %vm35, %v1934
    %1937 = vst.msk [vmem:[#allocation2 + $0x8] sm:$0xff] %vm35, %v1935
    // Predicated region
    $region22: #{encoder_forward.1} parent=1 // pred_check
      _
    $region23: #{encoder_forward.1} parent=1 // pred_check_branch
      %1939 = sbr.rel (0) target = $region25
    $region24: #{encoder_forward.1} parent=1 // pred_region
      %1941 = vsyncadd [#allocation3], 0
      %s1942 = sshll.u32 [#allocation2], 4
      %s1943 = int_to_ptr.vmem [resolvable:$true] %s1942
      %s1944 = sshll.u32 %s5, 4
      %s1945 = int_to_ptr.hbm [resolvable:$true] %s1944
      %1950 = dma.vmem_to_hbm [thread:$0]  %s1943, 256, %s1945, [#allocation3], 128, 128, 8
    $region25: #{encoder_forward.1} parent=1 // pred_fallthru
      _
    // Predicated region
    $region26: #{encoder_forward.1} parent=1 // pred_check
      _
    $region27: #{encoder_forward.1} parent=1 // pred_check_branch
      %1952 = sbr.rel (0) target = $region29
    $region28: #{encoder_forward.1} parent=1 // pred_region
      %1954 = dma.done [#allocation3], 256
    $region29: #{encoder_forward.1} parent=1 // pred_fallthru
      _
    %1955 = vsyncpa [#allocation3], 1

</llo_original>
